<compile_context>
chip_gen: v5e
topology: v5e:2x2
jax: 0.10.0
libtpu: 0.0.40
codegen_flags: <defaults>
</compile_context>

<pallas_src>
import functools

import numpy as np
import jax
import jax.numpy as jnp
from jax import lax
from jax.experimental import pallas as pl
from jax.experimental.pallas import tpu as pltpu


# ------------------------------ configuration -------------------------------
# args.c = 3, args.t_length = 5, args.interval = 1  ->  encoder in_c = 15
N_CHANNEL = 3
T_LENGTH = 5
IN_C = N_CHANNEL * T_LENGTH            # 15 input channels (stacked frames)
HIDDEN = 8                             # hidden width: W * HIDDEN == 128 lanes
H = 16
W = 16
LANES = W * HIDDEN                     # 128


def _round_up(v, m):
    return (v + m - 1) // m * m


IN_C_PAD = _round_up(IN_C, 8)          # 16 -> fused input width W*IN_C_PAD = 256


# -----------------------------------------------------------------------------
# Weight fusion: fold a 3x3 'same' conv into a single banded matmul operand.
# -----------------------------------------------------------------------------
def _band_selector(width, dx):
    """(width, width) selector S[w_in, w_out] = 1 iff w_in == w_out + dx - 1."""
    wi = np.arange(width)
    return jnp.asarray((wi[:, None] == wi[None, :] + (dx - 1)).astype(np.float32))


def fuse_conv3x3(w_hwio, bias, width=W, cin_pad=None, cout_pad=None):
    """Fold a 3x3 'same' conv into a (3*width*Cin, width*Cout) matrix.

    Fused activation layout is a[h, w*Cin + ci].  Column (dx) zero padding is
    encoded in the band selector, row (dy) padding is handled in-kernel with
    shift matrices, channel padding with zero rows/cols.
    """
    kh, kw, cin, cout = w_hwio.shape
    assert (kh, kw) == (3, 3)
    cin_pad = cin if cin_pad is None else cin_pad
    cout_pad = cout if cout_pad is None else cout_pad
    w = jnp.zeros((3, 3, cin_pad, cout_pad), w_hwio.dtype)
    w = w.at[:, :, :cin, :cout].set(w_hwio)
    b = jnp.zeros((cout_pad,), bias.dtype).at[:cout].set(bias)

    bands = []
    for dy in range(3):
        m = jnp.zeros((width * cin_pad, width * cout_pad), jnp.float32)
        for dx in range(3):
            # kron(S, w[dy, dx])[w_in*Cin + ci, w_out*Cout + co]
            #   = S[w_in, w_out] * w[dy, dx, ci, co]
            m = m + jnp.kron(_band_selector(width, dx), w[dy, dx])
        bands.append(m)
    w_fused = jnp.concatenate(bands, axis=0)        # (3*width*cin_pad, width*cout_pad)
    b_fused = jnp.tile(b, width)                    # (width*cout_pad,)
    return w_fused, b_fused


# -----------------------------------------------------------------------------
# Parameters (representative architecture; see TODO at top of file)
# -----------------------------------------------------------------------------
_LAYERS = [
    ("enc1", IN_C, HIDDEN), ("enc2", HIDDEN, HIDDEN),
    ("enc3", HIDDEN, HIDDEN), ("enc4", HIDDEN, HIDDEN),
    ("dec3", HIDDEN, HIDDEN), ("dec2", HIDDEN, HIDDEN),
    ("dec1", HIDDEN, HIDDEN), ("head", HIDDEN, N_CHANNEL),
]


def init_params(key):
    keys = jax.random.split(key, len(_LAYERS))
    params = {}
    for k, (name, ci, co) in zip(keys, _LAYERS):
        w = jax.random.normal(k, (3, 3, ci, co), jnp.float32) / np.sqrt(9.0 * ci)
        params[name] = {"w": w, "b": jnp.zeros((co,), jnp.float32)}
    return params


def fuse_params(params):
    """Precompute the lane-fused banded weights (done once, at 'construction')."""
    w_in, b_in = fuse_conv3x3(params["enc1"]["w"], params["enc1"]["b"],
                              cin_pad=IN_C_PAD)
    ws, bs = [], [b_in]
    for name in ["enc2", "enc3", "enc4", "dec3", "dec2", "dec1"]:
        wf, bf = fuse_conv3x3(params[name]["w"], params[name]["b"])
        ws.append(wf)
        bs.append(bf)
    w_head, b_head = fuse_conv3x3(params["head"]["w"], params["head"]["b"],
                                  cout_pad=HIDDEN)
    ws.append(w_head)
    bs.append(b_head)
    w_hid = jnp.stack(ws, axis=0)        # (7, 3*W*HIDDEN, W*HIDDEN) = (7, 384, 128)
    biases = jnp.stack(bs, axis=0)       # (8, 128)
    return w_in, w_hid, biases           # w_in: (3*W*IN_C_PAD, 128) = (768, 128)


# -----------------------------------------------------------------------------
# Fused Pallas kernel: full encoder + decoder + pixel loss, one batch / step.
# -----------------------------------------------------------------------------
def _unet_kernel(x_ref, gt_ref, w_in_ref, w_hid_ref, b_ref,
                 recon_ref, loss_ref, *, inv_n):
    h = x_ref.shape[1]

    x = x_ref[0]                          # (H, W*IN_C_PAD)  lane-dense
    gt = gt_ref[0]                        # (H, W*HIDDEN)    lane-dense

    # Row-shift matrices for the dy = -1 / +1 taps (zero padding at image
    # top/bottom):  (down @ a)[r] = a[r-1],  (up @ a)[r] = a[r+1].
    rows = lax.broadcasted_iota(jnp.int32, (h, h), 0)
    cols = lax.broadcasted_iota(jnp.int32, (h, h), 1)
    down = (rows == cols + 1).astype(jnp.float32)
    up = (rows == cols - 1).astype(jnp.float32)

    def conv3x3(a, w_fused, layer, relu, skip=None):
        # One im2col-style matmul per conv: K = 3*W*Cin (384/768), N = 128.
        above = jnp.dot(down, a, preferred_element_type=jnp.float32)   # x[h-1]
        below = jnp.dot(up, a, preferred_element_type=jnp.float32)     # x[h+1]
        patch = jnp.concatenate([above, a, below], axis=1)             # (H, 3*W*Cin)
        out = jnp.dot(patch, w_fused, preferred_element_type=jnp.float32)
        out = out + b_ref[layer:layer + 1, :]
        if skip is not None:
            out = out + skip
        if relu:
            out = jnp.maximum(out, 0.0)
        return out

    # ---- Encoder: feature + 3 skip connections ----------------------------
    skip1 = conv3x3(x, w_in_ref[...], 0, relu=True)
    skip2 = conv3x3(skip1, w_hid_ref[0], 1, relu=True)
    skip3 = conv3x3(skip2, w_hid_ref[1], 2, relu=True)
    feature = conv3x3(skip3, w_hid_ref[2], 3, relu=True)

    # ---- Decoder: skip-fused reconstruction --------------------------------
    d3 = conv3x3(feature, w_hid_ref[3], 4, relu=True, skip=skip3)
    d2 = conv3x3(d3, w_hid_ref[4], 5, relu=True, skip=skip2)
    d1 = conv3x3(d2, w_hid_ref[5], 6, relu=True, skip=skip1)
    recon = conv3x3(d1, w_hid_ref[6], 7, relu=False)     # head, Cout padded to 8

    recon_ref[0] = recon.astype(recon_ref.dtype)

    # ---- Pixel loss: MSE(reduction='none') -> per-sample mean --------------
    # Padded channels are exactly zero in both recon and gt, so reducing the
    # full (H, 128) tile equals reducing the real 3 channels.
    diff = recon - gt
    sq = diff * diff
    per_lane = jnp.sum(sq, axis=0, keepdims=True)        # (1, 128) sublane reduce
    total = jnp.sum(per_lane, axis=1, keepdims=True)     # (1, 1)   lane reduce
    loss_ref[0] = jnp.broadcast_to(total * inv_n, loss_ref.shape[1:])


def unet_fused_forward(fused_params, x_fused, gt_fused):
    """Single pallas_call over grid=(B,); weights are constant-indexed blocks."""
    w_in, w_hid, biases = fused_params
    batch = x_fused.shape[0]
    inv_n = 1.0 / float(N_CHANNEL * H * W)
    kernel = functools.partial(_unet_kernel, inv_n=inv_n)

    recon_f, loss_f = pl.pallas_call(
        kernel,
        out_shape=(jax.ShapeDtypeStruct((batch, H, LANES), jnp.float32),
                   jax.ShapeDtypeStruct((batch, 8, 128), jnp.float32)),
        grid=(batch,),
        in_specs=[
            pl.BlockSpec((1, H, W * IN_C_PAD), lambda b: (b, 0, 0)),   # x (lane-dense)
            pl.BlockSpec((1, H, LANES), lambda b: (b, 0, 0)),          # gt (lane-dense)
            pl.BlockSpec(w_in.shape, lambda b: (0, 0)),                # fused enc1 weights
            pl.BlockSpec(w_hid.shape, lambda b: (0, 0, 0)),            # fused layers 2..8
            pl.BlockSpec(biases.shape, lambda b: (0, 0)),              # fused biases
        ],
        out_specs=(
            pl.BlockSpec((1, H, LANES), lambda b: (b, 0, 0)),
            pl.BlockSpec((1, 8, 128), lambda b: (b, 0, 0)),
        ),
        compiler_params=pltpu.CompilerParams(
            dimension_semantics=("parallel",)),          # 2 TCs on v7x
    )(x_fused, gt_fused, w_in, w_hid, biases)

    return recon_f, loss_f[:, 0, 0]


# -----------------------------------------------------------------------------
# Module-level forward (mirrors Unet_Free_Supervised.forward, NCHW API)
# -----------------------------------------------------------------------------
def unet_free_supervised_forward(fused_params, x, gt=None, label=None, train=True):
    """criterion is assumed to be nn.MSELoss(reduction='none')."""
    batch = x.shape[0]

    if gt is not None:
        if train:
            # noise = zeros_like(gt[0]); gt[label.view(-1) == 1] = noise
            lab = label.reshape(-1)
            gt = jnp.where((lab == 1)[:, None, None, None], jnp.zeros_like(gt), gt)
        gt_target = gt[:, 3:6]                                  # (B, 3, H, W)
    else:
        # TODO(synk): the reference crashes if gt is None; we feed zeros and
        #             drop the loss entry instead.
        gt_target = jnp.zeros((batch, N_CHANNEL, H, W), jnp.float32)

    # ---- one-time API-boundary layout transforms (NCHW -> fused lane-dense) ----
    x_nhwc = jnp.transpose(x, (0, 2, 3, 1))                     # (B, H, W, IN_C)
    x_nhwc = jnp.pad(x_nhwc, ((0, 0), (0, 0), (0, 0), (0, IN_C_PAD - IN_C)))
    x_fused = x_nhwc.reshape(batch, H, W * IN_C_PAD)            # last dim 256

    gt_nhwc = jnp.transpose(gt_target, (0, 2, 3, 1))            # (B, H, W, 3)
    gt_nhwc = jnp.pad(gt_nhwc, ((0, 0), (0, 0), (0, 0), (0, HIDDEN - N_CHANNEL)))
    gt_fused = gt_nhwc.reshape(batch, H, LANES)                 # last dim 128

    recon_f, pixel_loss = unet_fused_forward(fused_params, x_fused, gt_fused)

    recon = recon_f.reshape(batch, H, W, HIDDEN)[..., :N_CHANNEL]
    recon = jnp.transpose(recon, (0, 3, 1, 2))                  # back to NCHW

    loss = {"pixel_loss": pixel_loss} if gt is not None else {}
    return recon, loss


# -----------------------------------------------------------------------------
# Pure-JAX reference (same representative architecture) for validation
# -----------------------------------------------------------------------------
def _forward_reference(params, x, gt, label, train=True):
    if train:
        lab = label.reshape(-1)
        gt = jnp.where((lab == 1)[:, None, None, None], jnp.zeros_like(gt), gt)
    a = jnp.transpose(x, (0, 2, 3, 1))

    def conv(a, name, relu, skip=None):
        w, b = params[name]["w"], params[name]["b"]
        ap = jnp.pad(a, ((0, 0), (1, 1), (1, 1), (0, 0)))
        out = jnp.zeros(a.shape[:3] + (w.shape[-1],), jnp.float32)
        for dy in range(3):
            for dx in range(3):
                out = out + jnp.einsum("bhwc,co->bhwo",
                                       ap[:, dy:dy + H, dx:dx + W, :], w[dy, dx],
                                       precision="highest")
        out = out + b
        if skip is not None:
            out = out + skip
        return jnp.maximum(out, 0.0) if relu else out

    s1 = conv(a, "enc1", True)
    s2 = conv(s1, "enc2", True)
    s3 = conv(s2, "enc3", True)
    f = conv(s3, "enc4", True)
    d3 = conv(f, "dec3", True, skip=s3)
    d2 = conv(d3, "dec2", True, skip=s2)
    d1 = conv(d2, "dec1", True, skip=s1)
    recon = jnp.transpose(conv(d1, "head", False), (0, 3, 1, 2))
    diff = recon - gt[:, 3:6]
    ploss = jnp.mean((diff * diff).reshape(x.shape[0], -1), axis=1)
    return recon, ploss


# -----------------------------------------------------------------------------
# Demo
# -----------------------------------------------------------------------------
if __name__ == "__main__":
    key = jax.random.PRNGKey(0)
    kx, kg, kp = jax.random.split(key, 3)

    B = 2
    x = jax.random.normal(kx, (B, IN_C, H, W), jnp.float32)
    gt = jax.random.normal(kg, (B, IN_C, H, W), jnp.float32)
    label = jnp.array([0, 1], jnp.int32)

    params = init_params(kp)
    fused = fuse_params(params)          # lane-fused weights built once

    fwd = jax.jit(functools.partial(unet_free_supervised_forward, train=True))
    recon, loss = fwd(fused, x, gt, label)
    jax.block_until_ready((recon, loss["pixel_loss"]))

    # Validate the fused kernel against the pure-JAX reference.
    ref_recon, ref_loss = _forward_reference(params, x, gt, label, train=True)
    np.testing.assert_allclose(np.asarray(recon), np.asarray(ref_recon),
                               rtol=5e-2, atol=5e-2)
    np.testing.assert_allclose(np.asarray(loss["pixel_loss"]), np.asarray(ref_loss),
                               rtol=5e-2, atol=5e-2)

    assert recon.shape == (B, N_CHANNEL, H, W)
    assert loss["pixel_loss"].shape == (B,)
    print("KERNEL_OK")
</pallas_src>

<mosaic_0001>
module attributes {stable_mosaic.version = 11 : i64} {
  func.func @_unet_kernel(%arg0: i32, %arg1: memref<1x16x256xf32, #tpu.memory_space<vmem>>, %arg2: memref<1x16x128xf32, #tpu.memory_space<vmem>>, %arg3: memref<768x128xf32, #tpu.memory_space<vmem>>, %arg4: memref<7x384x128xf32, #tpu.memory_space<vmem>>, %arg5: memref<8x128xf32, #tpu.memory_space<vmem>>, %arg6: memref<1x16x128xf32, #tpu.memory_space<vmem>>, %arg7: memref<1x8x128xf32, #tpu.memory_space<vmem>>) attributes {dimension_semantics = [#tpu.dimension_semantics<parallel>], iteration_bounds = array<i64: 2>, scalar_prefetch = 0 : i64, scratch_operands = 0 : i64, tpu.core_type = #tpu.core_type<tc>, window_params = [{transform_indices = @transform_0, window_bounds = array<i64: 1, 16, 256>}, {transform_indices = @transform_1, window_bounds = array<i64: 1, 16, 128>}, {pipeline_mode = #tpu.pipeline_mode<synchronous>, transform_indices = @transform_2, window_bounds = array<i64: 768, 128>}, {pipeline_mode = #tpu.pipeline_mode<synchronous>, transform_indices = @transform_3, window_bounds = array<i64: 7, 384, 128>}, {pipeline_mode = #tpu.pipeline_mode<synchronous>, transform_indices = @transform_4, window_bounds = array<i64: 8, 128>}, {transform_indices = @transform_5, window_bounds = array<i64: 1, 16, 128>}, {transform_indices = @transform_6, window_bounds = array<i64: 1, 8, 128>}]} {
    %c0 = arith.constant 0 : index
    %c0_0 = arith.constant 0 : index
    %c0_1 = arith.constant 0 : index
    %0 = vector.load %arg1[%c0, %c0_0, %c0_1] : memref<1x16x256xf32, #tpu.memory_space<vmem>>, vector<1x16x256xf32>
    %1 = vector.shape_cast %0 : vector<1x16x256xf32> to vector<16x256xf32>
    %c0_2 = arith.constant 0 : index
    %c0_3 = arith.constant 0 : index
    %c0_4 = arith.constant 0 : index
    %2 = vector.load %arg2[%c0_2, %c0_3, %c0_4] : memref<1x16x128xf32, #tpu.memory_space<vmem>>, vector<1x16x128xf32>
    %3 = vector.shape_cast %2 : vector<1x16x128xf32> to vector<16x128xf32>
    %4 = tpu.iota {dimensions = array<i32: 0>} : vector<16x16xi32>
    %5 = tpu.iota {dimensions = array<i32: 1>} : vector<16x16xi32>
    %c1_i32 = arith.constant 1 : i32
    %6 = vector.broadcast %c1_i32 : i32 to vector<16x16xi32>
    %7 = arith.addi %5, %6 : vector<16x16xi32>
    %8 = arith.cmpi eq, %4, %7 : vector<16x16xi32>
    %9 = arith.extui %8 : vector<16x16xi1> to vector<16x16xi32>
    %10 = arith.sitofp %9 : vector<16x16xi32> to vector<16x16xf32>
    %c1_i32_5 = arith.constant 1 : i32
    %11 = vector.broadcast %c1_i32_5 : i32 to vector<16x16xi32>
    %12 = arith.subi %5, %11 : vector<16x16xi32>
    %13 = arith.cmpi eq, %4, %12 : vector<16x16xi32>
    %14 = arith.extui %13 : vector<16x16xi1> to vector<16x16xi32>
    %15 = arith.sitofp %14 : vector<16x16xi32> to vector<16x16xf32>
    %c0_6 = arith.constant 0 : index
    %c0_7 = arith.constant 0 : index
    %16 = vector.load %arg3[%c0_6, %c0_7] : memref<768x128xf32, #tpu.memory_space<vmem>>, vector<768x128xf32>
    %cst = arith.constant dense<0.000000e+00> : vector<16x256xf32>
    %17 = tpu.matmul %10, %1, %cst {dimension_numbers = #tpu.dot_dimension_numbers<[1], [0], [0], [1], [0, 0, 1, 1], [], []>} : vector<16x16xf32>, vector<16x256xf32>, vector<16x256xf32> -> vector<16x256xf32>
    %cst_8 = arith.constant dense<0.000000e+00> : vector<16x256xf32>
    %18 = tpu.matmul %15, %1, %cst_8 {dimension_numbers = #tpu.dot_dimension_numbers<[1], [0], [0], [1], [0, 0, 1, 1], [], []>} : vector<16x16xf32>, vector<16x256xf32>, vector<16x256xf32> -> vector<16x256xf32>
    %19 = tpu.concatenate %17, %1, %18 in 1 : vector<16x256xf32>, vector<16x256xf32>, vector<16x256xf32> -> vector<16x768xf32>
    %cst_9 = arith.constant dense<0.000000e+00> : vector<16x128xf32>
    %20 = tpu.matmul %19, %16, %cst_9 {dimension_numbers = #tpu.dot_dimension_numbers<[1], [0], [0], [1], [0, 0, 1, 1], [], []>} : vector<16x768xf32>, vector<768x128xf32>, vector<16x128xf32> -> vector<16x128xf32>
    %c0_10 = arith.constant 0 : index
    %c0_11 = arith.constant 0 : index
    %21 = vector.load %arg5[%c0_10, %c0_11] : memref<8x128xf32, #tpu.memory_space<vmem>>, vector<1x128xf32>
    %22 = vector.broadcast %21 : vector<1x128xf32> to vector<16x128xf32>
    %23 = arith.addf %20, %22 : vector<16x128xf32>
    %cst_12 = arith.constant 0.000000e+00 : f32
    %24 = vector.broadcast %cst_12 : f32 to vector<16x128xf32>
    %25 = arith.maximumf %23, %24 : vector<16x128xf32>
    %c0_13 = arith.constant 0 : index
    %c0_14 = arith.constant 0 : index
    %c0_15 = arith.constant 0 : index
    %26 = vector.load %arg4[%c0_13, %c0_14, %c0_15] : memref<7x384x128xf32, #tpu.memory_space<vmem>>, vector<1x384x128xf32>
    %27 = vector.shape_cast %26 : vector<1x384x128xf32> to vector<384x128xf32>
    %cst_16 = arith.constant dense<0.000000e+00> : vector<16x128xf32>
    %28 = tpu.matmul %10, %25, %cst_16 {dimension_numbers = #tpu.dot_dimension_numbers<[1], [0], [0], [1], [0, 0, 1, 1], [], []>} : vector<16x16xf32>, vector<16x128xf32>, vector<16x128xf32> -> vector<16x128xf32>
    %cst_17 = arith.constant dense<0.000000e+00> : vector<16x128xf32>
    %29 = tpu.matmul %15, %25, %cst_17 {dimension_numbers = #tpu.dot_dimension_numbers<[1], [0], [0], [1], [0, 0, 1, 1], [], []>} : vector<16x16xf32>, vector<16x128xf32>, vector<16x128xf32> -> vector<16x128xf32>
    %30 = tpu.concatenate %28, %25, %29 in 1 : vector<16x128xf32>, vector<16x128xf32>, vector<16x128xf32> -> vector<16x384xf32>
    %cst_18 = arith.constant dense<0.000000e+00> : vector<16x128xf32>
    %31 = tpu.matmul %30, %27, %cst_18 {dimension_numbers = #tpu.dot_dimension_numbers<[1], [0], [0], [1], [0, 0, 1, 1], [], []>} : vector<16x384xf32>, vector<384x128xf32>, vector<16x128xf32> -> vector<16x128xf32>
    %c1 = arith.constant 1 : index
    %c0_19 = arith.constant 0 : index
    %32 = vector.load %arg5[%c1, %c0_19] : memref<8x128xf32, #tpu.memory_space<vmem>>, vector<1x128xf32>
    %33 = vector.broadcast %32 : vector<1x128xf32> to vector<16x128xf32>
    %34 = arith.addf %31, %33 : vector<16x128xf32>
    %cst_20 = arith.constant 0.000000e+00 : f32
    %35 = vector.broadcast %cst_20 : f32 to vector<16x128xf32>
    %36 = arith.maximumf %34, %35 : vector<16x128xf32>
    %c1_21 = arith.constant 1 : index
    %c0_22 = arith.constant 0 : index
    %c0_23 = arith.constant 0 : index
    %37 = vector.load %arg4[%c1_21, %c0_22, %c0_23] : memref<7x384x128xf32, #tpu.memory_space<vmem>>, vector<1x384x128xf32>
    %38 = vector.shape_cast %37 : vector<1x384x128xf32> to vector<384x128xf32>
    %cst_24 = arith.constant dense<0.000000e+00> : vector<16x128xf32>
    %39 = tpu.matmul %10, %36, %cst_24 {dimension_numbers = #tpu.dot_dimension_numbers<[1], [0], [0], [1], [0, 0, 1, 1], [], []>} : vector<16x16xf32>, vector<16x128xf32>, vector<16x128xf32> -> vector<16x128xf32>
    %cst_25 = arith.constant dense<0.000000e+00> : vector<16x128xf32>
    %40 = tpu.matmul %15, %36, %cst_25 {dimension_numbers = #tpu.dot_dimension_numbers<[1], [0], [0], [1], [0, 0, 1, 1], [], []>} : vector<16x16xf32>, vector<16x128xf32>, vector<16x128xf32> -> vector<16x128xf32>
    %41 = tpu.concatenate %39, %36, %40 in 1 : vector<16x128xf32>, vector<16x128xf32>, vector<16x128xf32> -> vector<16x384xf32>
    %cst_26 = arith.constant dense<0.000000e+00> : vector<16x128xf32>
    %42 = tpu.matmul %41, %38, %cst_26 {dimension_numbers = #tpu.dot_dimension_numbers<[1], [0], [0], [1], [0, 0, 1, 1], [], []>} : vector<16x384xf32>, vector<384x128xf32>, vector<16x128xf32> -> vector<16x128xf32>
    %c2 = arith.constant 2 : index
    %c0_27 = arith.constant 0 : index
    %43 = vector.load %arg5[%c2, %c0_27] : memref<8x128xf32, #tpu.memory_space<vmem>>, vector<1x128xf32>
    %44 = vector.broadcast %43 : vector<1x128xf32> to vector<16x128xf32>
    %45 = arith.addf %42, %44 : vector<16x128xf32>
    %cst_28 = arith.constant 0.000000e+00 : f32
    %46 = vector.broadcast %cst_28 : f32 to vector<16x128xf32>
    %47 = arith.maximumf %45, %46 : vector<16x128xf32>
    %c2_29 = arith.constant 2 : index
    %c0_30 = arith.constant 0 : index
    %c0_31 = arith.constant 0 : index
    %48 = vector.load %arg4[%c2_29, %c0_30, %c0_31] : memref<7x384x128xf32, #tpu.memory_space<vmem>>, vector<1x384x128xf32>
    %49 = vector.shape_cast %48 : vector<1x384x128xf32> to vector<384x128xf32>
    %cst_32 = arith.constant dense<0.000000e+00> : vector<16x128xf32>
    %50 = tpu.matmul %10, %47, %cst_32 {dimension_numbers = #tpu.dot_dimension_numbers<[1], [0], [0], [1], [0, 0, 1, 1], [], []>} : vector<16x16xf32>, vector<16x128xf32>, vector<16x128xf32> -> vector<16x128xf32>
    %cst_33 = arith.constant dense<0.000000e+00> : vector<16x128xf32>
    %51 = tpu.matmul %15, %47, %cst_33 {dimension_numbers = #tpu.dot_dimension_numbers<[1], [0], [0], [1], [0, 0, 1, 1], [], []>} : vector<16x16xf32>, vector<16x128xf32>, vector<16x128xf32> -> vector<16x128xf32>
    %52 = tpu.concatenate %50, %47, %51 in 1 : vector<16x128xf32>, vector<16x128xf32>, vector<16x128xf32> -> vector<16x384xf32>
    %cst_34 = arith.constant dense<0.000000e+00> : vector<16x128xf32>
    %53 = tpu.matmul %52, %49, %cst_34 {dimension_numbers = #tpu.dot_dimension_numbers<[1], [0], [0], [1], [0, 0, 1, 1], [], []>} : vector<16x384xf32>, vector<384x128xf32>, vector<16x128xf32> -> vector<16x128xf32>
    %c3 = arith.constant 3 : index
    %c0_35 = arith.constant 0 : index
    %54 = vector.load %arg5[%c3, %c0_35] : memref<8x128xf32, #tpu.memory_space<vmem>>, vector<1x128xf32>
    %55 = vector.broadcast %54 : vector<1x128xf32> to vector<16x128xf32>
    %56 = arith.addf %53, %55 : vector<16x128xf32>
    %cst_36 = arith.constant 0.000000e+00 : f32
    %57 = vector.broadcast %cst_36 : f32 to vector<16x128xf32>
    %58 = arith.maximumf %56, %57 : vector<16x128xf32>
    %c3_37 = arith.constant 3 : index
    %c0_38 = arith.constant 0 : index
    %c0_39 = arith.constant 0 : index
    %59 = vector.load %arg4[%c3_37, %c0_38, %c0_39] : memref<7x384x128xf32, #tpu.memory_space<vmem>>, vector<1x384x128xf32>
    %60 = vector.shape_cast %59 : vector<1x384x128xf32> to vector<384x128xf32>
    %cst_40 = arith.constant dense<0.000000e+00> : vector<16x128xf32>
    %61 = tpu.matmul %10, %58, %cst_40 {dimension_numbers = #tpu.dot_dimension_numbers<[1], [0], [0], [1], [0, 0, 1, 1], [], []>} : vector<16x16xf32>, vector<16x128xf32>, vector<16x128xf32> -> vector<16x128xf32>
    %cst_41 = arith.constant dense<0.000000e+00> : vector<16x128xf32>
    %62 = tpu.matmul %15, %58, %cst_41 {dimension_numbers = #tpu.dot_dimension_numbers<[1], [0], [0], [1], [0, 0, 1, 1], [], []>} : vector<16x16xf32>, vector<16x128xf32>, vector<16x128xf32> -> vector<16x128xf32>
    %63 = tpu.concatenate %61, %58, %62 in 1 : vector<16x128xf32>, vector<16x128xf32>, vector<16x128xf32> -> vector<16x384xf32>
    %cst_42 = arith.constant dense<0.000000e+00> : vector<16x128xf32>
    %64 = tpu.matmul %63, %60, %cst_42 {dimension_numbers = #tpu.dot_dimension_numbers<[1], [0], [0], [1], [0, 0, 1, 1], [], []>} : vector<16x384xf32>, vector<384x128xf32>, vector<16x128xf32> -> vector<16x128xf32>
    %c4 = arith.constant 4 : index
    %c0_43 = arith.constant 0 : index
    %65 = vector.load %arg5[%c4, %c0_43] : memref<8x128xf32, #tpu.memory_space<vmem>>, vector<1x128xf32>
    %66 = vector.broadcast %65 : vector<1x128xf32> to vector<16x128xf32>
    %67 = arith.addf %64, %66 : vector<16x128xf32>
    %68 = arith.addf %67, %47 : vector<16x128xf32>
    %cst_44 = arith.constant 0.000000e+00 : f32
    %69 = vector.broadcast %cst_44 : f32 to vector<16x128xf32>
    %70 = arith.maximumf %68, %69 : vector<16x128xf32>
    %c4_45 = arith.constant 4 : index
    %c0_46 = arith.constant 0 : index
    %c0_47 = arith.constant 0 : index
    %71 = vector.load %arg4[%c4_45, %c0_46, %c0_47] : memref<7x384x128xf32, #tpu.memory_space<vmem>>, vector<1x384x128xf32>
    %72 = vector.shape_cast %71 : vector<1x384x128xf32> to vector<384x128xf32>
    %cst_48 = arith.constant dense<0.000000e+00> : vector<16x128xf32>
    %73 = tpu.matmul %10, %70, %cst_48 {dimension_numbers = #tpu.dot_dimension_numbers<[1], [0], [0], [1], [0, 0, 1, 1], [], []>} : vector<16x16xf32>, vector<16x128xf32>, vector<16x128xf32> -> vector<16x128xf32>
    %cst_49 = arith.constant dense<0.000000e+00> : vector<16x128xf32>
    %74 = tpu.matmul %15, %70, %cst_49 {dimension_numbers = #tpu.dot_dimension_numbers<[1], [0], [0], [1], [0, 0, 1, 1], [], []>} : vector<16x16xf32>, vector<16x128xf32>, vector<16x128xf32> -> vector<16x128xf32>
    %75 = tpu.concatenate %73, %70, %74 in 1 : vector<16x128xf32>, vector<16x128xf32>, vector<16x128xf32> -> vector<16x384xf32>
    %cst_50 = arith.constant dense<0.000000e+00> : vector<16x128xf32>
    %76 = tpu.matmul %75, %72, %cst_50 {dimension_numbers = #tpu.dot_dimension_numbers<[1], [0], [0], [1], [0, 0, 1, 1], [], []>} : vector<16x384xf32>, vector<384x128xf32>, vector<16x128xf32> -> vector<16x128xf32>
    %c5 = arith.constant 5 : index
    %c0_51 = arith.constant 0 : index
    %77 = vector.load %arg5[%c5, %c0_51] : memref<8x128xf32, #tpu.memory_space<vmem>>, vector<1x128xf32>
    %78 = vector.broadcast %77 : vector<1x128xf32> to vector<16x128xf32>
    %79 = arith.addf %76, %78 : vector<16x128xf32>
    %80 = arith.addf %79, %36 : vector<16x128xf32>
    %cst_52 = arith.constant 0.000000e+00 : f32
    %81 = vector.broadcast %cst_52 : f32 to vector<16x128xf32>
    %82 = arith.maximumf %80, %81 : vector<16x128xf32>
    %c5_53 = arith.constant 5 : index
    %c0_54 = arith.constant 0 : index
    %c0_55 = arith.constant 0 : index
    %83 = vector.load %arg4[%c5_53, %c0_54, %c0_55] : memref<7x384x128xf32, #tpu.memory_space<vmem>>, vector<1x384x128xf32>
    %84 = vector.shape_cast %83 : vector<1x384x128xf32> to vector<384x128xf32>
    %cst_56 = arith.constant dense<0.000000e+00> : vector<16x128xf32>
    %85 = tpu.matmul %10, %82, %cst_56 {dimension_numbers = #tpu.dot_dimension_numbers<[1], [0], [0], [1], [0, 0, 1, 1], [], []>} : vector<16x16xf32>, vector<16x128xf32>, vector<16x128xf32> -> vector<16x128xf32>
    %cst_57 = arith.constant dense<0.000000e+00> : vector<16x128xf32>
    %86 = tpu.matmul %15, %82, %cst_57 {dimension_numbers = #tpu.dot_dimension_numbers<[1], [0], [0], [1], [0, 0, 1, 1], [], []>} : vector<16x16xf32>, vector<16x128xf32>, vector<16x128xf32> -> vector<16x128xf32>
    %87 = tpu.concatenate %85, %82, %86 in 1 : vector<16x128xf32>, vector<16x128xf32>, vector<16x128xf32> -> vector<16x384xf32>
    %cst_58 = arith.constant dense<0.000000e+00> : vector<16x128xf32>
    %88 = tpu.matmul %87, %84, %cst_58 {dimension_numbers = #tpu.dot_dimension_numbers<[1], [0], [0], [1], [0, 0, 1, 1], [], []>} : vector<16x384xf32>, vector<384x128xf32>, vector<16x128xf32> -> vector<16x128xf32>
    %c6 = arith.constant 6 : index
    %c0_59 = arith.constant 0 : index
    %89 = vector.load %arg5[%c6, %c0_59] : memref<8x128xf32, #tpu.memory_space<vmem>>, vector<1x128xf32>
    %90 = vector.broadcast %89 : vector<1x128xf32> to vector<16x128xf32>
    %91 = arith.addf %88, %90 : vector<16x128xf32>
    %92 = arith.addf %91, %25 : vector<16x128xf32>
    %cst_60 = arith.constant 0.000000e+00 : f32
    %93 = vector.broadcast %cst_60 : f32 to vector<16x128xf32>
    %94 = arith.maximumf %92, %93 : vector<16x128xf32>
    %c6_61 = arith.constant 6 : index
    %c0_62 = arith.constant 0 : index
    %c0_63 = arith.constant 0 : index
    %95 = vector.load %arg4[%c6_61, %c0_62, %c0_63] : memref<7x384x128xf32, #tpu.memory_space<vmem>>, vector<1x384x128xf32>
    %96 = vector.shape_cast %95 : vector<1x384x128xf32> to vector<384x128xf32>
    %cst_64 = arith.constant dense<0.000000e+00> : vector<16x128xf32>
    %97 = tpu.matmul %10, %94, %cst_64 {dimension_numbers = #tpu.dot_dimension_numbers<[1], [0], [0], [1], [0, 0, 1, 1], [], []>} : vector<16x16xf32>, vector<16x128xf32>, vector<16x128xf32> -> vector<16x128xf32>
    %cst_65 = arith.constant dense<0.000000e+00> : vector<16x128xf32>
    %98 = tpu.matmul %15, %94, %cst_65 {dimension_numbers = #tpu.dot_dimension_numbers<[1], [0], [0], [1], [0, 0, 1, 1], [], []>} : vector<16x16xf32>, vector<16x128xf32>, vector<16x128xf32> -> vector<16x128xf32>
    %99 = tpu.concatenate %97, %94, %98 in 1 : vector<16x128xf32>, vector<16x128xf32>, vector<16x128xf32> -> vector<16x384xf32>
    %cst_66 = arith.constant dense<0.000000e+00> : vector<16x128xf32>
    %100 = tpu.matmul %99, %96, %cst_66 {dimension_numbers = #tpu.dot_dimension_numbers<[1], [0], [0], [1], [0, 0, 1, 1], [], []>} : vector<16x384xf32>, vector<384x128xf32>, vector<16x128xf32> -> vector<16x128xf32>
    %c7 = arith.constant 7 : index
    %c0_67 = arith.constant 0 : index
    %101 = vector.load %arg5[%c7, %c0_67] : memref<8x128xf32, #tpu.memory_space<vmem>>, vector<1x128xf32>
    %102 = vector.broadcast %101 : vector<1x128xf32> to vector<16x128xf32>
    %103 = arith.addf %100, %102 : vector<16x128xf32>
    %c0_68 = arith.constant 0 : index
    %c0_69 = arith.constant 0 : index
    %c0_70 = arith.constant 0 : index
    %104 = vector.load %arg6[%c0_68, %c0_69, %c0_70] : memref<1x16x128xf32, #tpu.memory_space<vmem>>, vector<1x16x128xf32>
    %105 = vector.shape_cast %104 : vector<1x16x128xf32> to vector<16x128xf32>
    %106 = vector.shape_cast %103 : vector<16x128xf32> to vector<1x16x128xf32>
    tpu.vector_store %arg6[%c0_68, %c0_69, %c0_70], %106 {strides = array<i32>} : memref<1x16x128xf32, #tpu.memory_space<vmem>>, vector<1x16x128xf32>,
    %107 = arith.subf %103, %3 : vector<16x128xf32>
    %108 = arith.mulf %107, %107 : vector<16x128xf32>
    %cst_71 = arith.constant dense<0.000000e+00> : vector<128xf32>
    %109 = vector.multi_reduction <add>, %108, %cst_71 [0] : vector<16x128xf32> to vector<128xf32>
    %110 = vector.shape_cast %109 : vector<128xf32> to vector<1x128xf32>
    %cst_72 = arith.constant dense<0.000000e+00> : vector<1xf32>
    %111 = vector.multi_reduction <add>, %110, %cst_72 [1] : vector<1x128xf32> to vector<1xf32>
    %112 = vector.shape_cast %111 : vector<1xf32> to vector<1x1xf32>
    %cst_73 = arith.constant 0.00130208337 : f32
    %113 = vector.broadcast %cst_73 : f32 to vector<1x1xf32>
    %114 = arith.mulf %112, %113 : vector<1x1xf32>
    %115 = vector.shape_cast %114 : vector<1x1xf32> to vector<1x1xf32>
    %116 = vector.broadcast %115 : vector<1x1xf32> to vector<8x128xf32>
    %c0_74 = arith.constant 0 : index
    %c0_75 = arith.constant 0 : index
    %c0_76 = arith.constant 0 : index
    %117 = vector.load %arg7[%c0_74, %c0_75, %c0_76] : memref<1x8x128xf32, #tpu.memory_space<vmem>>, vector<1x8x128xf32>
    %118 = vector.shape_cast %117 : vector<1x8x128xf32> to vector<8x128xf32>
    %119 = vector.shape_cast %116 : vector<8x128xf32> to vector<1x8x128xf32>
    tpu.vector_store %arg7[%c0_74, %c0_75, %c0_76], %119 {strides = array<i32>} : memref<1x8x128xf32, #tpu.memory_space<vmem>>, vector<1x8x128xf32>,
    return
  }
  func.func @transform_0(%arg0: i32) -> (i32, i32, i32) {
    %c0_i32 = arith.constant 0 : i32
    %c0_i32_0 = arith.constant 0 : i32
    %c0_i32_1 = arith.constant 0 : i32
    return %arg0, %c0_i32, %c0_i32_0 : i32, i32, i32
  }
  func.func @transform_1(%arg0: i32) -> (i32, i32, i32) {
    %c0_i32 = arith.constant 0 : i32
    %c0_i32_0 = arith.constant 0 : i32
    %c0_i32_1 = arith.constant 0 : i32
    return %arg0, %c0_i32, %c0_i32_0 : i32, i32, i32
  }
  func.func @transform_2(%arg0: i32) -> (i32, i32) {
    %c0_i32 = arith.constant 0 : i32
    %c0_i32_0 = arith.constant 0 : i32
    %c0_i32_1 = arith.constant 0 : i32
    return %c0_i32, %c0_i32_0 : i32, i32
  }
  func.func @transform_3(%arg0: i32) -> (i32, i32, i32) {
    %c0_i32 = arith.constant 0 : i32
    %c0_i32_0 = arith.constant 0 : i32
    %c0_i32_1 = arith.constant 0 : i32
    %c0_i32_2 = arith.constant 0 : i32
    return %c0_i32, %c0_i32_0, %c0_i32_1 : i32, i32, i32
  }
  func.func @transform_4(%arg0: i32) -> (i32, i32) {
    %c0_i32 = arith.constant 0 : i32
    %c0_i32_0 = arith.constant 0 : i32
    %c0_i32_1 = arith.constant 0 : i32
    return %c0_i32, %c0_i32_0 : i32, i32
  }
  func.func @transform_5(%arg0: i32) -> (i32, i32, i32) {
    %c0_i32 = arith.constant 0 : i32
    %c0_i32_0 = arith.constant 0 : i32
    %c0_i32_1 = arith.constant 0 : i32
    return %arg0, %c0_i32, %c0_i32_0 : i32, i32, i32
  }
  func.func @transform_6(%arg0: i32) -> (i32, i32, i32) {
    %c0_i32 = arith.constant 0 : i32
    %c0_i32_0 = arith.constant 0 : i32
    %c0_i32_1 = arith.constant 0 : i32
    return %arg0, %c0_i32, %c0_i32_0 : i32, i32, i32
  }
}

</mosaic_0001>

<llo_original>
// kernel: unet_free_supervised_forward.1
$region0: #{unet_free_supervised_forward.1}
  #allocation0 [shape = 'u32[]', space=smem, size = 0x4, offset = 0x4, fixed_abs, tag = 'smem constant byte address 0x4 - core index']
  #allocation1 [shape = 'u32[72,128]{1,0:T(1,128)}', space=vmem, size = 0x9000, scoped, tag = 'internal scratch']
  %s0 = inlined_call_operand.vmem [shape: f32[2,16,256], index: 0, kind: input, shape index: {}]
  %s1 = inlined_call_operand.vmem [shape: f32[2,16,128], index: 1, kind: input, shape index: {}]
  %s2 = inlined_call_operand.vmem [shape: f32[768,128], index: 2, kind: input, shape index: {}]
  %s3 = inlined_call_operand.vmem [shape: f32[7,384,128], index: 3, kind: input, shape index: {}]
  %s4 = inlined_call_operand.vmem [shape: f32[8,128], index: 4, kind: input, shape index: {}]
  %s5 = inlined_call_operand.vmem [shape: f32[2,16,128], index: 5, kind: output, shape index: {0}]
  %s6 = inlined_call_operand.vmem [shape: f32[2,8,128], index: 6, kind: output, shape index: {1}]
  %7 = xla_tuple %s5, %s6
  %s8 = sld [smem:[#allocation0]]
  $region61: #{unet_free_supervised_forward.1} parent=0
    _
  %s10 = ssub.s32 1, %s8
  %s11 = scalar_select 0, %s10, %s8
  loop: start=0, step=1, limit=4
  $region2: #{unet_free_supervised_forward.1} parent=0 // loop_pre_header
    _
  $region3: #{unet_free_supervised_forward.1} parent=0 // loop_header
    %s13 = sphi 0, %s17
    %p14 = scmp.ge.s32.totalorder %s13, 4
    %s23 = sphi 0, %s25
    %s26 = sphi 0, %s23
    %s27 = sphi 0, %s26
    %s43 = sphi 0, %s27
    %s49 = sphi 0, %s51
    %s52 = sphi 0, %s49
    %s53 = sphi 0, %s52
    %s69 = sphi 0, %s53
    %s73 = sphi 0, %s73
    %s75 = sphi 0, %s73
    %s76 = sphi 0, %s75
    %s90 = sphi 0, %s76
    %s94 = sphi 0, %s94
    %s96 = sphi 0, %s94
    %s97 = sphi 0, %s96
    %s111 = sphi 0, %s97
    %s115 = sphi 0, %s115
    %s117 = sphi 0, %s115
    %s118 = sphi 0, %s117
    %s132 = sphi 0, %s118
    %s138 = sphi 0, %s140
    %s141 = sphi 0, %s138
    %s142 = sphi 0, %s141
    %s158 = sphi 0, %s142
    %s164 = sphi 0, %s166
    %s167 = sphi 0, %s164
    %s168 = sphi 0, %s167
    %s184 = sphi 0, %s168
  $region4: #{unet_free_supervised_forward.1} parent=0 // loop_header_branch
    %16 = sbr.rel (%p14) target = $region8
  $region5: #{unet_free_supervised_forward.1} parent=0 // loop_body
    %s18 = ssub.s32 %s13, 1
    %s19 = ssub.s32 %s13, 2
    %s20 = sadd.s32 %s13, 1
    %s21 = ssub.s32 %s13, %s20
    %p22 = scmp.eq.s32.totalorder %s21, 0
    %s24 = sadd.s32 %s23, 1
    %s25 = scalar_select %p22, %s23, %s24
    %p28 = pneg %p22
    %p29 = scmp.eq.s32.totalorder %s13, 1
    %p30 = por %p28, %p29
    %p31 = scmp.ne.s32.totalorder %s23, %s26
    %p32 = scmp.eq.s32.totalorder %s13, 0
    %p33 = por %p31, %p32
    %p34 = scmp.ne.s32.totalorder %s23, %s26
    %p35 = scmp.eq.s32.totalorder %s18, 1
    %p36 = por %p34, %p35
    %p37 = scmp.ne.s32.totalorder %s26, %s27
    %p38 = scmp.eq.s32.totalorder %s18, 0
    %p39 = por %p37, %p38
    %p40 = scmp.ne.s32.totalorder %s26, %s27
    %p41 = scmp.eq.s32.totalorder %s19, 1
    %p42 = por %p40, %p41
    %p44 = scmp.ne.s32.totalorder %s27, %s43
    %p45 = scmp.eq.s32.totalorder %s19, 0
    %p46 = por %p44, %p45
    %s47 = ssub.s32 %s13, %s20
    %p48 = scmp.eq.s32.totalorder %s47, 0
    %s50 = sadd.s32 %s49, 1
    %s51 = scalar_select %p48, %s49, %s50
    %p54 = pneg %p48
    %p55 = scmp.eq.s32.totalorder %s13, 1
    %p56 = por %p54, %p55
    %p57 = scmp.ne.s32.totalorder %s49, %s52
    %p58 = scmp.eq.s32.totalorder %s13, 0
    %p59 = por %p57, %p58
    %p60 = scmp.ne.s32.totalorder %s49, %s52
    %p61 = scmp.eq.s32.totalorder %s18, 1
    %p62 = por %p60, %p61
    %p63 = scmp.ne.s32.totalorder %s52, %s53
    %p64 = scmp.eq.s32.totalorder %s18, 0
    %p65 = por %p63, %p64
    %p66 = scmp.ne.s32.totalorder %s52, %s53
    %p67 = scmp.eq.s32.totalorder %s19, 1
    %p68 = por %p66, %p67
    %p70 = scmp.ne.s32.totalorder %s53, %s69
    %p71 = scmp.eq.s32.totalorder %s19, 0
    %p72 = por %p70, %p71
    %s74 = sadd.s32 %s73, 1
    %p77 = scmp.eq.s32.totalorder %s13, 1
    %p78 = scmp.ne.s32.totalorder %s73, %s75
    %p79 = scmp.eq.s32.totalorder %s13, 0
    %p80 = por %p78, %p79
    %p81 = scmp.ne.s32.totalorder %s73, %s75
    %p82 = scmp.eq.s32.totalorder %s18, 1
    %p83 = por %p81, %p82
    %p84 = scmp.ne.s32.totalorder %s75, %s76
    %p85 = scmp.eq.s32.totalorder %s18, 0
    %p86 = por %p84, %p85
    %p87 = scmp.ne.s32.totalorder %s75, %s76
    %p88 = scmp.eq.s32.totalorder %s19, 1
    %p89 = por %p87, %p88
    %p91 = scmp.ne.s32.totalorder %s76, %s90
    %p92 = scmp.eq.s32.totalorder %s19, 0
    %p93 = por %p91, %p92
    %s95 = sadd.s32 %s94, 1
    %p98 = scmp.eq.s32.totalorder %s13, 1
    %p99 = scmp.ne.s32.totalorder %s94, %s96
    %p100 = scmp.eq.s32.totalorder %s13, 0
    %p101 = por %p99, %p100
    %p102 = scmp.ne.s32.totalorder %s94, %s96
    %p103 = scmp.eq.s32.totalorder %s18, 1
    %p104 = por %p102, %p103
    %p105 = scmp.ne.s32.totalorder %s96, %s97
    %p106 = scmp.eq.s32.totalorder %s18, 0
    %p107 = por %p105, %p106
    %p108 = scmp.ne.s32.totalorder %s96, %s97
    %p109 = scmp.eq.s32.totalorder %s19, 1
    %p110 = por %p108, %p109
    %p112 = scmp.ne.s32.totalorder %s97, %s111
    %p113 = scmp.eq.s32.totalorder %s19, 0
    %p114 = por %p112, %p113
    %s116 = sadd.s32 %s115, 1
    %p119 = scmp.eq.s32.totalorder %s13, 1
    %p120 = scmp.ne.s32.totalorder %s115, %s117
    %p121 = scmp.eq.s32.totalorder %s13, 0
    %p122 = por %p120, %p121
    %p123 = scmp.ne.s32.totalorder %s115, %s117
    %p124 = scmp.eq.s32.totalorder %s18, 1
    %p125 = por %p123, %p124
    %p126 = scmp.ne.s32.totalorder %s117, %s118
    %p127 = scmp.eq.s32.totalorder %s18, 0
    %p128 = por %p126, %p127
    %p129 = scmp.ne.s32.totalorder %s117, %s118
    %p130 = scmp.eq.s32.totalorder %s19, 1
    %p131 = por %p129, %p130
    %p133 = scmp.ne.s32.totalorder %s118, %s132
    %p134 = scmp.eq.s32.totalorder %s19, 0
    %p135 = por %p133, %p134
    %s136 = ssub.s32 %s13, %s20
    %p137 = scmp.eq.s32.totalorder %s136, 0
    %s139 = sadd.s32 %s138, 1
    %s140 = scalar_select %p137, %s138, %s139
    %p143 = pneg %p137
    %p144 = scmp.eq.s32.totalorder %s13, 1
    %p145 = por %p143, %p144
    %p146 = scmp.ne.s32.totalorder %s138, %s141
    %p147 = scmp.eq.s32.totalorder %s13, 0
    %p148 = por %p146, %p147
    %p149 = scmp.ne.s32.totalorder %s138, %s141
    %p150 = scmp.eq.s32.totalorder %s18, 1
    %p151 = por %p149, %p150
    %p152 = scmp.ne.s32.totalorder %s141, %s142
    %p153 = scmp.eq.s32.totalorder %s18, 0
    %p154 = por %p152, %p153
    %p155 = scmp.ne.s32.totalorder %s141, %s142
    %p156 = scmp.eq.s32.totalorder %s19, 1
    %p157 = por %p155, %p156
    %p159 = scmp.ne.s32.totalorder %s142, %s158
    %p160 = scmp.eq.s32.totalorder %s19, 0
    %p161 = por %p159, %p160
    %s162 = ssub.s32 %s13, %s20
    %p163 = scmp.eq.s32.totalorder %s162, 0
    %s165 = sadd.s32 %s164, 1
    %s166 = scalar_select %p163, %s164, %s165
    %p169 = pneg %p163
    %p170 = scmp.eq.s32.totalorder %s13, 1
    %p171 = por %p169, %p170
    %p172 = scmp.ne.s32.totalorder %s164, %s167
    %p173 = scmp.eq.s32.totalorder %s13, 0
    %p174 = por %p172, %p173
    %p175 = scmp.ne.s32.totalorder %s164, %s167
    %p176 = scmp.eq.s32.totalorder %s18, 1
    %p177 = por %p175, %p176
    %p178 = scmp.ne.s32.totalorder %s167, %s168
    %p179 = scmp.eq.s32.totalorder %s18, 0
    %p180 = por %p178, %p179
    %p181 = scmp.ne.s32.totalorder %s167, %s168
    %p182 = scmp.eq.s32.totalorder %s19, 1
    %p183 = por %p181, %p182
    %p185 = scmp.ne.s32.totalorder %s168, %s184
    %p186 = scmp.eq.s32.totalorder %s19, 0
    %p187 = por %p185, %p186
    %p188 = scmp.le.s32.totalorder 1, %s13
    %p189 = scmp.lt.s32.totalorder %s13, 3
    %p190 = pnand %p188, %p189
    %p191 = pneg %p190
    // Predicated region
    $region9: #{unet_free_supervised_forward.1} parent=5 // pred_check
      _
    $region10: #{unet_free_supervised_forward.1} parent=5 // pred_check_branch
      %193 = sbr.rel (%p190) target = $region12
    $region11: #{unet_free_supervised_forward.1} parent=5 // pred_region
      %s194 = ssub.s32 %s13, 1
      // Predicated region
      $region13: #{unet_free_supervised_forward.1} parent=11 // pred_check
        %p195 = pneg %p86
      $region14: #{unet_free_supervised_forward.1} parent=11 // pred_check_branch
        %197 = sbr.rel (%p195) target = $region16
      $region15: #{unet_free_supervised_forward.1} parent=11 // pred_region
        _
      $region16: #{unet_free_supervised_forward.1} parent=11 // pred_fallthru
        _
      // Predicated region
      $region17: #{unet_free_supervised_forward.1} parent=11 // pred_check
        %p198 = pneg %p107
      $region18: #{unet_free_supervised_forward.1} parent=11 // pred_check_branch
        %200 = sbr.rel (%p198) target = $region20
      $region19: #{unet_free_supervised_forward.1} parent=11 // pred_region
        _
      $region20: #{unet_free_supervised_forward.1} parent=11 // pred_fallthru
        _
      // Predicated region
      $region21: #{unet_free_supervised_forward.1} parent=11 // pred_check
        %p201 = pneg %p128
      $region22: #{unet_free_supervised_forward.1} parent=11 // pred_check_branch
        %203 = sbr.rel (%p201) target = $region24
      $region23: #{unet_free_supervised_forward.1} parent=11 // pred_region
        _
      $region24: #{unet_free_supervised_forward.1} parent=11 // pred_fallthru
        _
    $region12: #{unet_free_supervised_forward.1} parent=5 // pred_fallthru
      _
    %p204 = scmp.lt.s32.totalorder %s13, 2
    // Predicated region
    $region25: #{unet_free_supervised_forward.1} parent=5 // pred_check
      %p205 = pneg %p204
    $region26: #{unet_free_supervised_forward.1} parent=5 // pred_check_branch
      %207 = sbr.rel (%p205) target = $region28
    $region27: #{unet_free_supervised_forward.1} parent=5 // pred_region
      // Predicated region
      $region29: #{unet_free_supervised_forward.1} parent=27 // pred_check
        %p208 = pneg %p33
      $region30: #{unet_free_supervised_forward.1} parent=27 // pred_check_branch
        %210 = sbr.rel (%p208) target = $region32
      $region31: #{unet_free_supervised_forward.1} parent=27 // pred_region
        %p211 = scmp.lt.s32.totalorder %s13, 1
        %s212 = scalar_select %p211, %s13, 1
        %s213 = smul.addr %s212, 4
        %s214 = smul.addr %s213, 8
        %s215 = scalar_lea.vmem %s0, %s214
      $region32: #{unet_free_supervised_forward.1} parent=27 // pred_fallthru
        _
      // Predicated region
      $region33: #{unet_free_supervised_forward.1} parent=27 // pred_check
        %p216 = pneg %p59
      $region34: #{unet_free_supervised_forward.1} parent=27 // pred_check_branch
        %218 = sbr.rel (%p216) target = $region36
      $region35: #{unet_free_supervised_forward.1} parent=27 // pred_region
        %p219 = scmp.lt.s32.totalorder %s13, 1
        %s220 = scalar_select %p219, %s13, 1
        %s221 = smul.addr %s220, 2
        %s222 = smul.addr %s221, 8
        %s223 = scalar_lea.vmem %s1, %s222
      $region36: #{unet_free_supervised_forward.1} parent=27 // pred_fallthru
        _
    $region28: #{unet_free_supervised_forward.1} parent=5 // pred_fallthru
      _
    %p224 = scmp.le.s32.totalorder 1, %s13
    %p225 = scmp.lt.s32.totalorder %s13, 3
    %p226 = pnand %p224, %p225
    %p227 = pneg %p226
    // Predicated region
    $region37: #{unet_free_supervised_forward.1} parent=5 // pred_check
      _
    $region38: #{unet_free_supervised_forward.1} parent=5 // pred_check_branch
      %229 = sbr.rel (%p226) target = $region40
    $region39: #{unet_free_supervised_forward.1} parent=5 // pred_region
      %s230 = ssub.s32 %s13, 1
      %p231 = scmp.lt.s32.totalorder %s18, 1
      %s232 = scalar_select %p231, %s18, 1
      %s233 = smul.addr %s232, 4
      %s234 = smul.addr %s233, 8
      %s235 = scalar_lea.vmem %s0, %s234
      %p236 = pneg %p39
      %p237 = pneg %p36
      %p238 = scmp.lt.s32.totalorder %s18, 1
      %s239 = scalar_select %p238, %s18, 1
      %s240 = smul.addr %s239, 2
      %s241 = smul.addr %s240, 8
      %s242 = scalar_lea.vmem %s1, %s241
      %p243 = pneg %p65
      %p244 = pneg %p62
      %p245 = pneg %p86
      %p246 = pneg %p83
      %p247 = pneg %p107
      %p248 = pneg %p104
      %p249 = pneg %p128
      %p250 = pneg %p125
      %p251 = pneg %p154
      %p252 = pneg %p151
      %p253 = scmp.lt.s32.totalorder %s18, 1
      %s254 = scalar_select %p253, %s18, 1
      %s255 = smul.addr %s254, 2
      %s256 = smul.addr %s255, 8
      %s257 = scalar_lea.vmem %s5, %s256
      %p258 = pneg %p180
      %p259 = pneg %p177
      %p260 = scmp.lt.s32.totalorder %s18, 1
      %s261 = scalar_select %p260, %s18, 1
      %s262 = smul.addr %s261, 8
      %s263 = scalar_lea.vmem %s6, %s262
      %p264 = scmp.lt.s32.totalorder %s18, 1
      %s265 = scalar_select %p264, %s18, 1
      %s266 = smul.addr %s265, 4
      %s267 = smul.addr %s266, 8
      %s268 = scalar_lea.vmem %s0, %s267
      %p269 = scmp.lt.s32.totalorder %s18, 1
      %s270 = scalar_select %p269, %s18, 1
      %s271 = smul.addr %s270, 2
      %s272 = smul.addr %s271, 8
      %s273 = scalar_lea.vmem %s1, %s272
      %p274 = scmp.lt.s32.totalorder %s18, 1
      %s275 = scalar_select %p274, %s18, 1
      %s276 = smul.addr %s275, 2
      %s277 = smul.addr %s276, 8
      %s278 = scalar_lea.vmem %s5, %s277
      %p279 = scmp.lt.s32.totalorder %s18, 1
      %s280 = scalar_select %p279, %s18, 1
      %s281 = smul.addr %s280, 8
      %s282 = scalar_lea.vmem %s6, %s281
      %v283 = vld [vmem:[%s268] sm:$0xff]
      %v284 = vld [vmem:[%s268 + $0x8] sm:$0xff]
      %v285 = vld [vmem:[%s268 + $0x10] sm:$0xff]
      %v286 = vld [vmem:[%s268 + $0x18] sm:$0xff]
      %v287 = vld [vmem:[%s273] sm:$0xff]
      %v288 = vld [vmem:[%s273 + $0x8] sm:$0xff]
      %v289 = vlaneseq
      %v290 = vshrl.u32 %v289, 7
      %v291 = vadd.s32 %v290, 8
      %v292 = vlaneseq
      %v293 = vand.u32 %v292, 127
      %v294 = vadd.s32 %v293, 1
      %vm295 = vcmp.eq.s32.totalorder %v290, %v294
      %vm296 = vcmp.eq.s32.totalorder %v291, %v294
      %v297 = vsel %vm295, 1, 0
      %v298 = vsel %vm296, 1, 0
      %v299 = vcvt.s32.f32 %v297
      %v300 = vcvt.s32.f32 %v298
      %v301 = vsub.s32 %v293, 1
      %vm302 = vcmp.eq.s32.totalorder %v290, %v301
      %vm303 = vcmp.eq.s32.totalorder %v291, %v301
      %v304 = vsel %vm302, 1, 0
      %v305 = vsel %vm303, 1, 0
      %v306 = vcvt.s32.f32 %v304
      %v307 = vcvt.s32.f32 %v305
      %v308 = vld [vmem:[%s2] sm:$0xff]
      %v309 = vld [vmem:[%s2 + $0x8] sm:$0xff]
      %v310 = vld [vmem:[%s2 + $0x10] sm:$0xff]
      %v311 = vld [vmem:[%s2 + $0x18] sm:$0xff]
      %v312 = vld [vmem:[%s2 + $0x20] sm:$0xff]
      %v313 = vld [vmem:[%s2 + $0x28] sm:$0xff]
      %v314 = vld [vmem:[%s2 + $0x30] sm:$0xff]
      %v315 = vld [vmem:[%s2 + $0x38] sm:$0xff]
      %v316 = vld [vmem:[%s2 + $0x40] sm:$0xff]
      %v317 = vld [vmem:[%s2 + $0x48] sm:$0xff]
      %v318 = vld [vmem:[%s2 + $0x50] sm:$0xff]
      %v319 = vld [vmem:[%s2 + $0x58] sm:$0xff]
      %v320 = vld [vmem:[%s2 + $0x60] sm:$0xff]
      %v321 = vld [vmem:[%s2 + $0x68] sm:$0xff]
      %v322 = vld [vmem:[%s2 + $0x70] sm:$0xff]
      %v323 = vld [vmem:[%s2 + $0x78] sm:$0xff]
      %v324 = vld [vmem:[%s2 + $0x80] sm:$0xff]
      %v325 = vld [vmem:[%s2 + $0x88] sm:$0xff]
      %v326 = vld [vmem:[%s2 + $0x90] sm:$0xff]
      %v327 = vld [vmem:[%s2 + $0x98] sm:$0xff]
      %v328 = vld [vmem:[%s2 + $0xa0] sm:$0xff]
      %v329 = vld [vmem:[%s2 + $0xa8] sm:$0xff]
      %v330 = vld [vmem:[%s2 + $0xb0] sm:$0xff]
      %v331 = vld [vmem:[%s2 + $0xb8] sm:$0xff]
      %v332 = vld [vmem:[%s2 + $0xc0] sm:$0xff]
      %v333 = vld [vmem:[%s2 + $0xc8] sm:$0xff]
      %v334 = vld [vmem:[%s2 + $0xd0] sm:$0xff]
      %v335 = vld [vmem:[%s2 + $0xd8] sm:$0xff]
      %v336 = vld [vmem:[%s2 + $0xe0] sm:$0xff]
      %v337 = vld [vmem:[%s2 + $0xe8] sm:$0xff]
      %v338 = vld [vmem:[%s2 + $0xf0] sm:$0xff]
      %v339 = vld [vmem:[%s2 + $0xf8] sm:$0xff]
      %v340 = vld [vmem:[%s2 + $0x100] sm:$0xff]
      %v341 = vld [vmem:[%s2 + $0x108] sm:$0xff]
      %v342 = vld [vmem:[%s2 + $0x110] sm:$0xff]
      %v343 = vld [vmem:[%s2 + $0x118] sm:$0xff]
      %v344 = vld [vmem:[%s2 + $0x120] sm:$0xff]
      %v345 = vld [vmem:[%s2 + $0x128] sm:$0xff]
      %v346 = vld [vmem:[%s2 + $0x130] sm:$0xff]
      %v347 = vld [vmem:[%s2 + $0x138] sm:$0xff]
      %v348 = vld [vmem:[%s2 + $0x140] sm:$0xff]
      %v349 = vld [vmem:[%s2 + $0x148] sm:$0xff]
      %v350 = vld [vmem:[%s2 + $0x150] sm:$0xff]
      %v351 = vld [vmem:[%s2 + $0x158] sm:$0xff]
      %v352 = vld [vmem:[%s2 + $0x160] sm:$0xff]
      %v353 = vld [vmem:[%s2 + $0x168] sm:$0xff]
      %v354 = vld [vmem:[%s2 + $0x170] sm:$0xff]
      %v355 = vld [vmem:[%s2 + $0x178] sm:$0xff]
      %v356 = vld [vmem:[%s2 + $0x180] sm:$0xff]
      %v357 = vld [vmem:[%s2 + $0x188] sm:$0xff]
      %v358 = vld [vmem:[%s2 + $0x190] sm:$0xff]
      %v359 = vld [vmem:[%s2 + $0x198] sm:$0xff]
      %v360 = vld [vmem:[%s2 + $0x1a0] sm:$0xff]
      %v361 = vld [vmem:[%s2 + $0x1a8] sm:$0xff]
      %v362 = vld [vmem:[%s2 + $0x1b0] sm:$0xff]
      %v363 = vld [vmem:[%s2 + $0x1b8] sm:$0xff]
      %v364 = vld [vmem:[%s2 + $0x1c0] sm:$0xff]
      %v365 = vld [vmem:[%s2 + $0x1c8] sm:$0xff]
      %v366 = vld [vmem:[%s2 + $0x1d0] sm:$0xff]
      %v367 = vld [vmem:[%s2 + $0x1d8] sm:$0xff]
      %v368 = vld [vmem:[%s2 + $0x1e0] sm:$0xff]
      %v369 = vld [vmem:[%s2 + $0x1e8] sm:$0xff]
      %v370 = vld [vmem:[%s2 + $0x1f0] sm:$0xff]
      %v371 = vld [vmem:[%s2 + $0x1f8] sm:$0xff]
      %v372 = vld [vmem:[%s2 + $0x200] sm:$0xff]
      %v373 = vld [vmem:[%s2 + $0x208] sm:$0xff]
      %v374 = vld [vmem:[%s2 + $0x210] sm:$0xff]
      %v375 = vld [vmem:[%s2 + $0x218] sm:$0xff]
      %v376 = vld [vmem:[%s2 + $0x220] sm:$0xff]
      %v377 = vld [vmem:[%s2 + $0x228] sm:$0xff]
      %v378 = vld [vmem:[%s2 + $0x230] sm:$0xff]
      %v379 = vld [vmem:[%s2 + $0x238] sm:$0xff]
      %v380 = vld [vmem:[%s2 + $0x240] sm:$0xff]
      %v381 = vld [vmem:[%s2 + $0x248] sm:$0xff]
      %v382 = vld [vmem:[%s2 + $0x250] sm:$0xff]
      %v383 = vld [vmem:[%s2 + $0x258] sm:$0xff]
      %v384 = vld [vmem:[%s2 + $0x260] sm:$0xff]
      %v385 = vld [vmem:[%s2 + $0x268] sm:$0xff]
      %v386 = vld [vmem:[%s2 + $0x270] sm:$0xff]
      %v387 = vld [vmem:[%s2 + $0x278] sm:$0xff]
      %v388 = vld [vmem:[%s2 + $0x280] sm:$0xff]
      %v389 = vld [vmem:[%s2 + $0x288] sm:$0xff]
      %v390 = vld [vmem:[%s2 + $0x290] sm:$0xff]
      %v391 = vld [vmem:[%s2 + $0x298] sm:$0xff]
      %v392 = vld [vmem:[%s2 + $0x2a0] sm:$0xff]
      %v393 = vld [vmem:[%s2 + $0x2a8] sm:$0xff]
      %v394 = vld [vmem:[%s2 + $0x2b0] sm:$0xff]
      %v395 = vld [vmem:[%s2 + $0x2b8] sm:$0xff]
      %v396 = vld [vmem:[%s2 + $0x2c0] sm:$0xff]
      %v397 = vld [vmem:[%s2 + $0x2c8] sm:$0xff]
      %v398 = vld [vmem:[%s2 + $0x2d0] sm:$0xff]
      %v399 = vld [vmem:[%s2 + $0x2d8] sm:$0xff]
      %v400 = vld [vmem:[%s2 + $0x2e0] sm:$0xff]
      %v401 = vld [vmem:[%s2 + $0x2e8] sm:$0xff]
      %v402 = vld [vmem:[%s2 + $0x2f0] sm:$0xff]
      %v403 = vld [vmem:[%s2 + $0x2f8] sm:$0xff]
      %vm404 = vcmask 130048
      %v406 = vsel %vm404, %v299, 0
      %v409 = vsel %vm404, %v300, 0
      %411 = vmatpush.msra.mxu0 0.0
      %412 = vmatpush.msra.mxu0 0.0
      %413 = vmatpush.msra.mxu0 0.0
      %414 = vmatpush.msra.mxu0 0.0
      %415 = vmatpush.msra.mxu0 0.0
      %416 = vmatpush.msra.mxu0 0.0
      %417 = vmatpush.msra.mxu0 0.0
      %418 = vmatpush.msra.mxu0 0.0
      %419 = vmatpush.msra.mxu0 0.0
      %420 = vmatpush.msra.mxu0 0.0
      %421 = vmatpush.msra.mxu0 0.0
      %422 = vmatpush.msra.mxu0 0.0
      %423 = vmatpush.msra.mxu0 0.0
      %424 = vmatpush.msra.mxu0 0.0
      %425 = vmatpush.msra.mxu0 %v285
      %426 = vmatpush.msra.mxu0 %v283
      %427 = vmatmul.f32.gmra.mxu0 %v406
      %v428 = vpop.f32.mrf.mxu0
      %v429 = vadd.f32 0.0, %v428
      %430 = vmatmul.f32.gmra.mxu0 %v409
      %v431 = vpop.f32.mrf.mxu0
      %v432 = vadd.f32 0.0, %v431
      %433 = vdwg.mxu0
      %434 = vmatpush.msra.mxu0 0.0
      %435 = vmatpush.msra.mxu0 0.0
      %436 = vmatpush.msra.mxu0 0.0
      %437 = vmatpush.msra.mxu0 0.0
      %438 = vmatpush.msra.mxu0 0.0
      %439 = vmatpush.msra.mxu0 0.0
      %440 = vmatpush.msra.mxu0 0.0
      %441 = vmatpush.msra.mxu0 0.0
      %442 = vmatpush.msra.mxu0 0.0
      %443 = vmatpush.msra.mxu0 0.0
      %444 = vmatpush.msra.mxu0 0.0
      %445 = vmatpush.msra.mxu0 0.0
      %446 = vmatpush.msra.mxu0 0.0
      %447 = vmatpush.msra.mxu0 0.0
      %448 = vmatpush.msra.mxu0 %v286
      %449 = vmatpush.msra.mxu0 %v284
      %450 = vmatmul.f32.gmra.mxu0 %v406
      %v451 = vpop.f32.mrf.mxu0
      %v452 = vadd.f32 0.0, %v451
      %453 = vmatmul.f32.gmra.mxu0 %v409
      %v454 = vpop.f32.mrf.mxu0
      %v455 = vadd.f32 0.0, %v454
      %456 = vdwg.mxu0
      %v458 = vsel %vm404, %v306, 0
      %v461 = vsel %vm404, %v307, 0
      %463 = vmatpush.msra.mxu0 0.0
      %464 = vmatpush.msra.mxu0 0.0
      %465 = vmatpush.msra.mxu0 0.0
      %466 = vmatpush.msra.mxu0 0.0
      %467 = vmatpush.msra.mxu0 0.0
      %468 = vmatpush.msra.mxu0 0.0
      %469 = vmatpush.msra.mxu0 0.0
      %470 = vmatpush.msra.mxu0 0.0
      %471 = vmatpush.msra.mxu0 0.0
      %472 = vmatpush.msra.mxu0 0.0
      %473 = vmatpush.msra.mxu0 0.0
      %474 = vmatpush.msra.mxu0 0.0
      %475 = vmatpush.msra.mxu0 0.0
      %476 = vmatpush.msra.mxu0 0.0
      %477 = vmatpush.msra.mxu0 %v285
      %478 = vmatpush.msra.mxu0 %v283
      %479 = vmatmul.f32.gmra.mxu0 %v458
      %v480 = vpop.f32.mrf.mxu0
      %v481 = vadd.f32 0.0, %v480
      %482 = vmatmul.f32.gmra.mxu0 %v461
      %v483 = vpop.f32.mrf.mxu0
      %v484 = vadd.f32 0.0, %v483
      %485 = vdwg.mxu0
      %486 = vmatpush.msra.mxu0 0.0
      %487 = vmatpush.msra.mxu0 0.0
      %488 = vmatpush.msra.mxu0 0.0
      %489 = vmatpush.msra.mxu0 0.0
      %490 = vmatpush.msra.mxu0 0.0
      %491 = vmatpush.msra.mxu0 0.0
      %492 = vmatpush.msra.mxu0 0.0
      %493 = vmatpush.msra.mxu0 0.0
      %494 = vmatpush.msra.mxu0 0.0
      %495 = vmatpush.msra.mxu0 0.0
      %496 = vmatpush.msra.mxu0 0.0
      %497 = vmatpush.msra.mxu0 0.0
      %498 = vmatpush.msra.mxu0 0.0
      %499 = vmatpush.msra.mxu0 0.0
      %500 = vmatpush.msra.mxu0 %v286
      %501 = vmatpush.msra.mxu0 %v284
      %502 = vmatmul.f32.gmra.mxu0 %v458
      %v503 = vpop.f32.mrf.mxu0
      %v504 = vadd.f32 0.0, %v503
      %505 = vmatmul.f32.gmra.mxu0 %v461
      %v506 = vpop.f32.mrf.mxu0
      %v507 = vadd.f32 0.0, %v506
      %508 = vdwg.mxu0
      %v509 = vld [vmem:[%s4] sm:$0x1]
      %v510 = vperm.slane %v509, 0
      %511 = vmatpush.msra.mxu0 %v323
      %512 = vmatpush.msra.mxu0 %v322
      %513 = vmatpush.msra.mxu0 %v321
      %514 = vmatpush.msra.mxu0 %v320
      %515 = vmatpush.msra.mxu0 %v319
      %516 = vmatpush.msra.mxu0 %v318
      %517 = vmatpush.msra.mxu0 %v317
      %518 = vmatpush.msra.mxu0 %v316
      %519 = vmatpush.msra.mxu0 %v315
      %520 = vmatpush.msra.mxu0 %v314
      %521 = vmatpush.msra.mxu0 %v313
      %522 = vmatpush.msra.mxu0 %v312
      %523 = vmatpush.msra.mxu0 %v311
      %524 = vmatpush.msra.mxu0 %v310
      %525 = vmatpush.msra.mxu0 %v309
      %526 = vmatpush.msra.mxu0 %v308
      %527 = vmatmul.f32.gmra.mxu0 %v429
      %v528 = vpop.f32.mrf.mxu0
      %v529 = vadd.f32 %v510, %v528
      %530 = vmatmul.f32.gmra.mxu0 %v432
      %v531 = vpop.f32.mrf.mxu0
      %v532 = vadd.f32 %v510, %v531
      %533 = vdwg.mxu0
      %534 = vmatpush.msra.mxu0 %v339
      %535 = vmatpush.msra.mxu0 %v338
      %536 = vmatpush.msra.mxu0 %v337
      %537 = vmatpush.msra.mxu0 %v336
      %538 = vmatpush.msra.mxu0 %v335
      %539 = vmatpush.msra.mxu0 %v334
      %540 = vmatpush.msra.mxu0 %v333
      %541 = vmatpush.msra.mxu0 %v332
      %542 = vmatpush.msra.mxu0 %v331
      %543 = vmatpush.msra.mxu0 %v330
      %544 = vmatpush.msra.mxu0 %v329
      %545 = vmatpush.msra.mxu0 %v328
      %546 = vmatpush.msra.mxu0 %v327
      %547 = vmatpush.msra.mxu0 %v326
      %548 = vmatpush.msra.mxu0 %v325
      %549 = vmatpush.msra.mxu0 %v324
      %550 = vmatmul.f32.gmra.mxu0 %v452
      %v551 = vpop.f32.mrf.mxu0
      %v552 = vadd.f32 %v529, %v551
      %553 = vmatmul.f32.gmra.mxu0 %v455
      %v554 = vpop.f32.mrf.mxu0
      %v555 = vadd.f32 %v532, %v554
      %556 = vdwg.mxu0
      %557 = vmatpush.msra.mxu0 %v355
      %558 = vmatpush.msra.mxu0 %v354
      %559 = vmatpush.msra.mxu0 %v353
      %560 = vmatpush.msra.mxu0 %v352
      %561 = vmatpush.msra.mxu0 %v351
      %562 = vmatpush.msra.mxu0 %v350
      %563 = vmatpush.msra.mxu0 %v349
      %564 = vmatpush.msra.mxu0 %v348
      %565 = vmatpush.msra.mxu0 %v347
      %566 = vmatpush.msra.mxu0 %v346
      %567 = vmatpush.msra.mxu0 %v345
      %568 = vmatpush.msra.mxu0 %v344
      %569 = vmatpush.msra.mxu0 %v343
      %570 = vmatpush.msra.mxu0 %v342
      %571 = vmatpush.msra.mxu0 %v341
      %572 = vmatpush.msra.mxu0 %v340
      %573 = vmatmul.f32.gmra.mxu0 %v283
      %v574 = vpop.f32.mrf.mxu0
      %v575 = vadd.f32 %v552, %v574
      %576 = vmatmul.f32.gmra.mxu0 %v285
      %v577 = vpop.f32.mrf.mxu0
      %v578 = vadd.f32 %v555, %v577
      %579 = vdwg.mxu0
      %580 = vmatpush.msra.mxu0 %v371
      %581 = vmatpush.msra.mxu0 %v370
      %582 = vmatpush.msra.mxu0 %v369
      %583 = vmatpush.msra.mxu0 %v368
      %584 = vmatpush.msra.mxu0 %v367
      %585 = vmatpush.msra.mxu0 %v366
      %586 = vmatpush.msra.mxu0 %v365
      %587 = vmatpush.msra.mxu0 %v364
      %588 = vmatpush.msra.mxu0 %v363
      %589 = vmatpush.msra.mxu0 %v362
      %590 = vmatpush.msra.mxu0 %v361
      %591 = vmatpush.msra.mxu0 %v360
      %592 = vmatpush.msra.mxu0 %v359
      %593 = vmatpush.msra.mxu0 %v358
      %594 = vmatpush.msra.mxu0 %v357
      %595 = vmatpush.msra.mxu0 %v356
      %596 = vmatmul.f32.gmra.mxu0 %v284
      %v597 = vpop.f32.mrf.mxu0
      %v598 = vadd.f32 %v575, %v597
      %599 = vmatmul.f32.gmra.mxu0 %v286
      %v600 = vpop.f32.mrf.mxu0
      %v601 = vadd.f32 %v578, %v600
      %602 = vdwg.mxu0
      %603 = vmatpush.msra.mxu0 %v387
      %604 = vmatpush.msra.mxu0 %v386
      %605 = vmatpush.msra.mxu0 %v385
      %606 = vmatpush.msra.mxu0 %v384
      %607 = vmatpush.msra.mxu0 %v383
      %608 = vmatpush.msra.mxu0 %v382
      %609 = vmatpush.msra.mxu0 %v381
      %610 = vmatpush.msra.mxu0 %v380
      %611 = vmatpush.msra.mxu0 %v379
      %612 = vmatpush.msra.mxu0 %v378
      %613 = vmatpush.msra.mxu0 %v377
      %614 = vmatpush.msra.mxu0 %v376
      %615 = vmatpush.msra.mxu0 %v375
      %616 = vmatpush.msra.mxu0 %v374
      %617 = vmatpush.msra.mxu0 %v373
      %618 = vmatpush.msra.mxu0 %v372
      %619 = vmatmul.f32.gmra.mxu0 %v481
      %v620 = vpop.f32.mrf.mxu0
      %v621 = vadd.f32 %v598, %v620
      %622 = vmatmul.f32.gmra.mxu0 %v484
      %v623 = vpop.f32.mrf.mxu0
      %v624 = vadd.f32 %v601, %v623
      %625 = vdwg.mxu0
      %626 = vmatpush.msra.mxu0 %v403
      %627 = vmatpush.msra.mxu0 %v402
      %628 = vmatpush.msra.mxu0 %v401
      %629 = vmatpush.msra.mxu0 %v400
      %630 = vmatpush.msra.mxu0 %v399
      %631 = vmatpush.msra.mxu0 %v398
      %632 = vmatpush.msra.mxu0 %v397
      %633 = vmatpush.msra.mxu0 %v396
      %634 = vmatpush.msra.mxu0 %v395
      %635 = vmatpush.msra.mxu0 %v394
      %636 = vmatpush.msra.mxu0 %v393
      %637 = vmatpush.msra.mxu0 %v392
      %638 = vmatpush.msra.mxu0 %v391
      %639 = vmatpush.msra.mxu0 %v390
      %640 = vmatpush.msra.mxu0 %v389
      %641 = vmatpush.msra.mxu0 %v388
      %642 = vmatmul.f32.gmra.mxu0 %v504
      %v643 = vpop.f32.mrf.mxu0
      %v644 = vadd.f32 %v621, %v643
      %645 = vmatmul.f32.gmra.mxu0 %v507
      %v646 = vpop.f32.mrf.mxu0
      %v647 = vadd.f32 %v624, %v646
      %648 = vdwg.mxu0
      %v649 = vmax.f32 %v644, 0.0
      %v650 = vmax.f32 %v647, 0.0
      %v651 = vld [vmem:[%s3] sm:$0xff]
      %v652 = vld [vmem:[%s3 + $0x8] sm:$0xff]
      %v653 = vld [vmem:[%s3 + $0x10] sm:$0xff]
      %v654 = vld [vmem:[%s3 + $0x18] sm:$0xff]
      %v655 = vld [vmem:[%s3 + $0x20] sm:$0xff]
      %v656 = vld [vmem:[%s3 + $0x28] sm:$0xff]
      %v657 = vld [vmem:[%s3 + $0x30] sm:$0xff]
      %v658 = vld [vmem:[%s3 + $0x38] sm:$0xff]
      %v659 = vld [vmem:[%s3 + $0x40] sm:$0xff]
      %v660 = vld [vmem:[%s3 + $0x48] sm:$0xff]
      %v661 = vld [vmem:[%s3 + $0x50] sm:$0xff]
      %v662 = vld [vmem:[%s3 + $0x58] sm:$0xff]
      %v663 = vld [vmem:[%s3 + $0x60] sm:$0xff]
      %v664 = vld [vmem:[%s3 + $0x68] sm:$0xff]
      %v665 = vld [vmem:[%s3 + $0x70] sm:$0xff]
      %v666 = vld [vmem:[%s3 + $0x78] sm:$0xff]
      %v667 = vld [vmem:[%s3 + $0x80] sm:$0xff]
      %v668 = vld [vmem:[%s3 + $0x88] sm:$0xff]
      %v669 = vld [vmem:[%s3 + $0x90] sm:$0xff]
      %v670 = vld [vmem:[%s3 + $0x98] sm:$0xff]
      %v671 = vld [vmem:[%s3 + $0xa0] sm:$0xff]
      %v672 = vld [vmem:[%s3 + $0xa8] sm:$0xff]
      %v673 = vld [vmem:[%s3 + $0xb0] sm:$0xff]
      %v674 = vld [vmem:[%s3 + $0xb8] sm:$0xff]
      %v675 = vld [vmem:[%s3 + $0xc0] sm:$0xff]
      %v676 = vld [vmem:[%s3 + $0xc8] sm:$0xff]
      %v677 = vld [vmem:[%s3 + $0xd0] sm:$0xff]
      %v678 = vld [vmem:[%s3 + $0xd8] sm:$0xff]
      %v679 = vld [vmem:[%s3 + $0xe0] sm:$0xff]
      %v680 = vld [vmem:[%s3 + $0xe8] sm:$0xff]
      %v681 = vld [vmem:[%s3 + $0xf0] sm:$0xff]
      %v682 = vld [vmem:[%s3 + $0xf8] sm:$0xff]
      %v683 = vld [vmem:[%s3 + $0x100] sm:$0xff]
      %v684 = vld [vmem:[%s3 + $0x108] sm:$0xff]
      %v685 = vld [vmem:[%s3 + $0x110] sm:$0xff]
      %v686 = vld [vmem:[%s3 + $0x118] sm:$0xff]
      %v687 = vld [vmem:[%s3 + $0x120] sm:$0xff]
      %v688 = vld [vmem:[%s3 + $0x128] sm:$0xff]
      %v689 = vld [vmem:[%s3 + $0x130] sm:$0xff]
      %v690 = vld [vmem:[%s3 + $0x138] sm:$0xff]
      %v691 = vld [vmem:[%s3 + $0x140] sm:$0xff]
      %v692 = vld [vmem:[%s3 + $0x148] sm:$0xff]
      %v693 = vld [vmem:[%s3 + $0x150] sm:$0xff]
      %v694 = vld [vmem:[%s3 + $0x158] sm:$0xff]
      %v695 = vld [vmem:[%s3 + $0x160] sm:$0xff]
      %v696 = vld [vmem:[%s3 + $0x168] sm:$0xff]
      %v697 = vld [vmem:[%s3 + $0x170] sm:$0xff]
      %v698 = vld [vmem:[%s3 + $0x178] sm:$0xff]
      %699 = vmatpush.msra.mxu0 0.0
      %700 = vmatpush.msra.mxu0 0.0
      %701 = vmatpush.msra.mxu0 0.0
      %702 = vmatpush.msra.mxu0 0.0
      %703 = vmatpush.msra.mxu0 0.0
      %704 = vmatpush.msra.mxu0 0.0
      %705 = vmatpush.msra.mxu0 0.0
      %706 = vmatpush.msra.mxu0 0.0
      %707 = vmatpush.msra.mxu0 0.0
      %708 = vmatpush.msra.mxu0 0.0
      %709 = vmatpush.msra.mxu0 0.0
      %710 = vmatpush.msra.mxu0 0.0
      %711 = vmatpush.msra.mxu0 0.0
      %712 = vmatpush.msra.mxu0 0.0
      %713 = vmatpush.msra.mxu0 %v650
      %714 = vmatpush.msra.mxu0 %v649
      %715 = vmatmul.f32.gmra.mxu0 %v406
      %v716 = vpop.f32.mrf.mxu0
      %v717 = vadd.f32 0.0, %v716
      %718 = vmatmul.f32.gmra.mxu0 %v409
      %v719 = vpop.f32.mrf.mxu0
      %v720 = vadd.f32 0.0, %v719
      %721 = vdwg.mxu0
      %722 = vmatpush.msra.mxu0 0.0
      %723 = vmatpush.msra.mxu0 0.0
      %724 = vmatpush.msra.mxu0 0.0
      %725 = vmatpush.msra.mxu0 0.0
      %726 = vmatpush.msra.mxu0 0.0
      %727 = vmatpush.msra.mxu0 0.0
      %728 = vmatpush.msra.mxu0 0.0
      %729 = vmatpush.msra.mxu0 0.0
      %730 = vmatpush.msra.mxu0 0.0
      %731 = vmatpush.msra.mxu0 0.0
      %732 = vmatpush.msra.mxu0 0.0
      %733 = vmatpush.msra.mxu0 0.0
      %734 = vmatpush.msra.mxu0 0.0
      %735 = vmatpush.msra.mxu0 0.0
      %736 = vmatpush.msra.mxu0 %v650
      %737 = vmatpush.msra.mxu0 %v649
      %738 = vmatmul.f32.gmra.mxu0 %v458
      %v739 = vpop.f32.mrf.mxu0
      %v740 = vadd.f32 0.0, %v739
      %741 = vmatmul.f32.gmra.mxu0 %v461
      %v742 = vpop.f32.mrf.mxu0
      %v743 = vadd.f32 0.0, %v742
      %744 = vdwg.mxu0
      %v745 = vld [vmem:[%s4 + $0x1] sm:$0x1]
      %v746 = vperm.slane %v745, 0
      %747 = vmatpush.msra.mxu0 %v666
      %748 = vmatpush.msra.mxu0 %v665
      %749 = vmatpush.msra.mxu0 %v664
      %750 = vmatpush.msra.mxu0 %v663
      %751 = vmatpush.msra.mxu0 %v662
      %752 = vmatpush.msra.mxu0 %v661
      %753 = vmatpush.msra.mxu0 %v660
      %754 = vmatpush.msra.mxu0 %v659
      %755 = vmatpush.msra.mxu0 %v658
      %756 = vmatpush.msra.mxu0 %v657
      %757 = vmatpush.msra.mxu0 %v656
      %758 = vmatpush.msra.mxu0 %v655
      %759 = vmatpush.msra.mxu0 %v654
      %760 = vmatpush.msra.mxu0 %v653
      %761 = vmatpush.msra.mxu0 %v652
      %762 = vmatpush.msra.mxu0 %v651
      %763 = vmatmul.f32.gmra.mxu0 %v717
      %v764 = vpop.f32.mrf.mxu0
      %v765 = vadd.f32 %v746, %v764
      %766 = vmatmul.f32.gmra.mxu0 %v720
      %v767 = vpop.f32.mrf.mxu0
      %v768 = vadd.f32 %v746, %v767
      %769 = vdwg.mxu0
      %770 = vmatpush.msra.mxu0 %v682
      %771 = vmatpush.msra.mxu0 %v681
      %772 = vmatpush.msra.mxu0 %v680
      %773 = vmatpush.msra.mxu0 %v679
      %774 = vmatpush.msra.mxu0 %v678
      %775 = vmatpush.msra.mxu0 %v677
      %776 = vmatpush.msra.mxu0 %v676
      %777 = vmatpush.msra.mxu0 %v675
      %778 = vmatpush.msra.mxu0 %v674
      %779 = vmatpush.msra.mxu0 %v673
      %780 = vmatpush.msra.mxu0 %v672
      %781 = vmatpush.msra.mxu0 %v671
      %782 = vmatpush.msra.mxu0 %v670
      %783 = vmatpush.msra.mxu0 %v669
      %784 = vmatpush.msra.mxu0 %v668
      %785 = vmatpush.msra.mxu0 %v667
      %786 = vmatmul.f32.gmra.mxu0 %v649
      %v787 = vpop.f32.mrf.mxu0
      %v788 = vadd.f32 %v765, %v787
      %789 = vmatmul.f32.gmra.mxu0 %v650
      %v790 = vpop.f32.mrf.mxu0
      %v791 = vadd.f32 %v768, %v790
      %792 = vdwg.mxu0
      %793 = vmatpush.msra.mxu0 %v698
      %794 = vmatpush.msra.mxu0 %v697
      %795 = vmatpush.msra.mxu0 %v696
      %796 = vmatpush.msra.mxu0 %v695
      %797 = vmatpush.msra.mxu0 %v694
      %798 = vmatpush.msra.mxu0 %v693
      %799 = vmatpush.msra.mxu0 %v692
      %800 = vmatpush.msra.mxu0 %v691
      %801 = vmatpush.msra.mxu0 %v690
      %802 = vmatpush.msra.mxu0 %v689
      %803 = vmatpush.msra.mxu0 %v688
      %804 = vmatpush.msra.mxu0 %v687
      %805 = vmatpush.msra.mxu0 %v686
      %806 = vmatpush.msra.mxu0 %v685
      %807 = vmatpush.msra.mxu0 %v684
      %808 = vmatpush.msra.mxu0 %v683
      %809 = vmatmul.f32.gmra.mxu0 %v740
      %v810 = vpop.f32.mrf.mxu0
      %v811 = vadd.f32 %v788, %v810
      %812 = vmatmul.f32.gmra.mxu0 %v743
      %v813 = vpop.f32.mrf.mxu0
      %v814 = vadd.f32 %v791, %v813
      %815 = vdwg.mxu0
      %v816 = vmax.f32 %v811, 0.0
      %v817 = vmax.f32 %v814, 0.0
      %s818 = scalar_lea.vmem %s3, 384
      %v819 = vld [vmem:[%s818] sm:$0xff]
      %v820 = vld [vmem:[%s818 + $0x8] sm:$0xff]
      %v821 = vld [vmem:[%s818 + $0x10] sm:$0xff]
      %v822 = vld [vmem:[%s818 + $0x18] sm:$0xff]
      %v823 = vld [vmem:[%s818 + $0x20] sm:$0xff]
      %v824 = vld [vmem:[%s818 + $0x28] sm:$0xff]
      %v825 = vld [vmem:[%s818 + $0x30] sm:$0xff]
      %v826 = vld [vmem:[%s818 + $0x38] sm:$0xff]
      %v827 = vld [vmem:[%s818 + $0x40] sm:$0xff]
      %v828 = vld [vmem:[%s818 + $0x48] sm:$0xff]
      %v829 = vld [vmem:[%s818 + $0x50] sm:$0xff]
      %v830 = vld [vmem:[%s818 + $0x58] sm:$0xff]
      %v831 = vld [vmem:[%s818 + $0x60] sm:$0xff]
      %v832 = vld [vmem:[%s818 + $0x68] sm:$0xff]
      %v833 = vld [vmem:[%s818 + $0x70] sm:$0xff]
      %v834 = vld [vmem:[%s818 + $0x78] sm:$0xff]
      %v835 = vld [vmem:[%s818 + $0x80] sm:$0xff]
      %v836 = vld [vmem:[%s818 + $0x88] sm:$0xff]
      %v837 = vld [vmem:[%s818 + $0x90] sm:$0xff]
      %v838 = vld [vmem:[%s818 + $0x98] sm:$0xff]
      %v839 = vld [vmem:[%s818 + $0xa0] sm:$0xff]
      %v840 = vld [vmem:[%s818 + $0xa8] sm:$0xff]
      %v841 = vld [vmem:[%s818 + $0xb0] sm:$0xff]
      %v842 = vld [vmem:[%s818 + $0xb8] sm:$0xff]
      %v843 = vld [vmem:[%s818 + $0xc0] sm:$0xff]
      %v844 = vld [vmem:[%s818 + $0xc8] sm:$0xff]
      %v845 = vld [vmem:[%s818 + $0xd0] sm:$0xff]
      %v846 = vld [vmem:[%s818 + $0xd8] sm:$0xff]
      %v847 = vld [vmem:[%s818 + $0xe0] sm:$0xff]
      %v848 = vld [vmem:[%s818 + $0xe8] sm:$0xff]
      %v849 = vld [vmem:[%s818 + $0xf0] sm:$0xff]
      %v850 = vld [vmem:[%s818 + $0xf8] sm:$0xff]
      %v851 = vld [vmem:[%s818 + $0x100] sm:$0xff]
      %v852 = vld [vmem:[%s818 + $0x108] sm:$0xff]
      %v853 = vld [vmem:[%s818 + $0x110] sm:$0xff]
      %v854 = vld [vmem:[%s818 + $0x118] sm:$0xff]
      %v855 = vld [vmem:[%s818 + $0x120] sm:$0xff]
      %v856 = vld [vmem:[%s818 + $0x128] sm:$0xff]
      %v857 = vld [vmem:[%s818 + $0x130] sm:$0xff]
      %v858 = vld [vmem:[%s818 + $0x138] sm:$0xff]
      %v859 = vld [vmem:[%s818 + $0x140] sm:$0xff]
      %v860 = vld [vmem:[%s818 + $0x148] sm:$0xff]
      %v861 = vld [vmem:[%s818 + $0x150] sm:$0xff]
      %v862 = vld [vmem:[%s818 + $0x158] sm:$0xff]
      %v863 = vld [vmem:[%s818 + $0x160] sm:$0xff]
      %v864 = vld [vmem:[%s818 + $0x168] sm:$0xff]
      %v865 = vld [vmem:[%s818 + $0x170] sm:$0xff]
      %v866 = vld [vmem:[%s818 + $0x178] sm:$0xff]
      %867 = vmatpush.msra.mxu0 0.0
      %868 = vmatpush.msra.mxu0 0.0
      %869 = vmatpush.msra.mxu0 0.0
      %870 = vmatpush.msra.mxu0 0.0
      %871 = vmatpush.msra.mxu0 0.0
      %872 = vmatpush.msra.mxu0 0.0
      %873 = vmatpush.msra.mxu0 0.0
      %874 = vmatpush.msra.mxu0 0.0
      %875 = vmatpush.msra.mxu0 0.0
      %876 = vmatpush.msra.mxu0 0.0
      %877 = vmatpush.msra.mxu0 0.0
      %878 = vmatpush.msra.mxu0 0.0
      %879 = vmatpush.msra.mxu0 0.0
      %880 = vmatpush.msra.mxu0 0.0
      %881 = vmatpush.msra.mxu0 %v817
      %882 = vmatpush.msra.mxu0 %v816
      %883 = vmatmul.f32.gmra.mxu0 %v406
      %v884 = vpop.f32.mrf.mxu0
      %v885 = vadd.f32 0.0, %v884
      %886 = vmatmul.f32.gmra.mxu0 %v409
      %v887 = vpop.f32.mrf.mxu0
      %v888 = vadd.f32 0.0, %v887
      %889 = vdwg.mxu0
      %890 = vmatpush.msra.mxu0 0.0
      %891 = vmatpush.msra.mxu0 0.0
      %892 = vmatpush.msra.mxu0 0.0
      %893 = vmatpush.msra.mxu0 0.0
      %894 = vmatpush.msra.mxu0 0.0
      %895 = vmatpush.msra.mxu0 0.0
      %896 = vmatpush.msra.mxu0 0.0
      %897 = vmatpush.msra.mxu0 0.0
      %898 = vmatpush.msra.mxu0 0.0
      %899 = vmatpush.msra.mxu0 0.0
      %900 = vmatpush.msra.mxu0 0.0
      %901 = vmatpush.msra.mxu0 0.0
      %902 = vmatpush.msra.mxu0 0.0
      %903 = vmatpush.msra.mxu0 0.0
      %904 = vmatpush.msra.mxu0 %v817
      %905 = vmatpush.msra.mxu0 %v816
      %906 = vmatmul.f32.gmra.mxu0 %v458
      %v907 = vpop.f32.mrf.mxu0
      %v908 = vadd.f32 0.0, %v907
      %909 = vmatmul.f32.gmra.mxu0 %v461
      %v910 = vpop.f32.mrf.mxu0
      %v911 = vadd.f32 0.0, %v910
      %912 = vdwg.mxu0
      %v913 = vld [vmem:[%s4 + $0x2] sm:$0x1]
      %v914 = vperm.slane %v913, 0
      %915 = vmatpush.msra.mxu0 %v834
      %916 = vmatpush.msra.mxu0 %v833
      %917 = vmatpush.msra.mxu0 %v832
      %918 = vmatpush.msra.mxu0 %v831
      %919 = vmatpush.msra.mxu0 %v830
      %920 = vmatpush.msra.mxu0 %v829
      %921 = vmatpush.msra.mxu0 %v828
      %922 = vmatpush.msra.mxu0 %v827
      %923 = vmatpush.msra.mxu0 %v826
      %924 = vmatpush.msra.mxu0 %v825
      %925 = vmatpush.msra.mxu0 %v824
      %926 = vmatpush.msra.mxu0 %v823
      %927 = vmatpush.msra.mxu0 %v822
      %928 = vmatpush.msra.mxu0 %v821
      %929 = vmatpush.msra.mxu0 %v820
      %930 = vmatpush.msra.mxu0 %v819
      %931 = vmatmul.f32.gmra.mxu0 %v885
      %v932 = vpop.f32.mrf.mxu0
      %v933 = vadd.f32 %v914, %v932
      %934 = vmatmul.f32.gmra.mxu0 %v888
      %v935 = vpop.f32.mrf.mxu0
      %v936 = vadd.f32 %v914, %v935
      %937 = vdwg.mxu0
      %938 = vmatpush.msra.mxu0 %v850
      %939 = vmatpush.msra.mxu0 %v849
      %940 = vmatpush.msra.mxu0 %v848
      %941 = vmatpush.msra.mxu0 %v847
      %942 = vmatpush.msra.mxu0 %v846
      %943 = vmatpush.msra.mxu0 %v845
      %944 = vmatpush.msra.mxu0 %v844
      %945 = vmatpush.msra.mxu0 %v843
      %946 = vmatpush.msra.mxu0 %v842
      %947 = vmatpush.msra.mxu0 %v841
      %948 = vmatpush.msra.mxu0 %v840
      %949 = vmatpush.msra.mxu0 %v839
      %950 = vmatpush.msra.mxu0 %v838
      %951 = vmatpush.msra.mxu0 %v837
      %952 = vmatpush.msra.mxu0 %v836
      %953 = vmatpush.msra.mxu0 %v835
      %954 = vmatmul.f32.gmra.mxu0 %v816
      %v955 = vpop.f32.mrf.mxu0
      %v956 = vadd.f32 %v933, %v955
      %957 = vmatmul.f32.gmra.mxu0 %v817
      %v958 = vpop.f32.mrf.mxu0
      %v959 = vadd.f32 %v936, %v958
      %960 = vdwg.mxu0
      %961 = vmatpush.msra.mxu0 %v866
      %962 = vmatpush.msra.mxu0 %v865
      %963 = vmatpush.msra.mxu0 %v864
      %964 = vmatpush.msra.mxu0 %v863
      %965 = vmatpush.msra.mxu0 %v862
      %966 = vmatpush.msra.mxu0 %v861
      %967 = vmatpush.msra.mxu0 %v860
      %968 = vmatpush.msra.mxu0 %v859
      %969 = vmatpush.msra.mxu0 %v858
      %970 = vmatpush.msra.mxu0 %v857
      %971 = vmatpush.msra.mxu0 %v856
      %972 = vmatpush.msra.mxu0 %v855
      %973 = vmatpush.msra.mxu0 %v854
      %974 = vmatpush.msra.mxu0 %v853
      %975 = vmatpush.msra.mxu0 %v852
      %976 = vmatpush.msra.mxu0 %v851
      %977 = vmatmul.f32.gmra.mxu0 %v908
      %v978 = vpop.f32.mrf.mxu0
      %v979 = vadd.f32 %v956, %v978
      %980 = vmatmul.f32.gmra.mxu0 %v911
      %v981 = vpop.f32.mrf.mxu0
      %v982 = vadd.f32 %v959, %v981
      %983 = vdwg.mxu0
      %v984 = vmax.f32 %v979, 0.0
      %v985 = vmax.f32 %v982, 0.0
      %s986 = scalar_lea.vmem %s3, 768
      %v987 = vld [vmem:[%s986] sm:$0xff]
      %v988 = vld [vmem:[%s986 + $0x8] sm:$0xff]
      %v989 = vld [vmem:[%s986 + $0x10] sm:$0xff]
      %v990 = vld [vmem:[%s986 + $0x18] sm:$0xff]
      %v991 = vld [vmem:[%s986 + $0x20] sm:$0xff]
      %v992 = vld [vmem:[%s986 + $0x28] sm:$0xff]
      %v993 = vld [vmem:[%s986 + $0x30] sm:$0xff]
      %v994 = vld [vmem:[%s986 + $0x38] sm:$0xff]
      %v995 = vld [vmem:[%s986 + $0x40] sm:$0xff]
      %v996 = vld [vmem:[%s986 + $0x48] sm:$0xff]
      %v997 = vld [vmem:[%s986 + $0x50] sm:$0xff]
      %v998 = vld [vmem:[%s986 + $0x58] sm:$0xff]
      %v999 = vld [vmem:[%s986 + $0x60] sm:$0xff]
      %v1000 = vld [vmem:[%s986 + $0x68] sm:$0xff]
      %v1001 = vld [vmem:[%s986 + $0x70] sm:$0xff]
      %v1002 = vld [vmem:[%s986 + $0x78] sm:$0xff]
      %v1003 = vld [vmem:[%s986 + $0x80] sm:$0xff]
      %v1004 = vld [vmem:[%s986 + $0x88] sm:$0xff]
      %v1005 = vld [vmem:[%s986 + $0x90] sm:$0xff]
      %v1006 = vld [vmem:[%s986 + $0x98] sm:$0xff]
      %v1007 = vld [vmem:[%s986 + $0xa0] sm:$0xff]
      %v1008 = vld [vmem:[%s986 + $0xa8] sm:$0xff]
      %v1009 = vld [vmem:[%s986 + $0xb0] sm:$0xff]
      %v1010 = vld [vmem:[%s986 + $0xb8] sm:$0xff]
      %v1011 = vld [vmem:[%s986 + $0xc0] sm:$0xff]
      %v1012 = vld [vmem:[%s986 + $0xc8] sm:$0xff]
      %v1013 = vld [vmem:[%s986 + $0xd0] sm:$0xff]
      %v1014 = vld [vmem:[%s986 + $0xd8] sm:$0xff]
      %v1015 = vld [vmem:[%s986 + $0xe0] sm:$0xff]
      %v1016 = vld [vmem:[%s986 + $0xe8] sm:$0xff]
      %v1017 = vld [vmem:[%s986 + $0xf0] sm:$0xff]
      %v1018 = vld [vmem:[%s986 + $0xf8] sm:$0xff]
      %v1019 = vld [vmem:[%s986 + $0x100] sm:$0xff]
      %v1020 = vld [vmem:[%s986 + $0x108] sm:$0xff]
      %v1021 = vld [vmem:[%s986 + $0x110] sm:$0xff]
      %v1022 = vld [vmem:[%s986 + $0x118] sm:$0xff]
      %v1023 = vld [vmem:[%s986 + $0x120] sm:$0xff]
      %v1024 = vld [vmem:[%s986 + $0x128] sm:$0xff]
      %v1025 = vld [vmem:[%s986 + $0x130] sm:$0xff]
      %v1026 = vld [vmem:[%s986 + $0x138] sm:$0xff]
      %v1027 = vld [vmem:[%s986 + $0x140] sm:$0xff]
      %v1028 = vld [vmem:[%s986 + $0x148] sm:$0xff]
      %v1029 = vld [vmem:[%s986 + $0x150] sm:$0xff]
      %v1030 = vld [vmem:[%s986 + $0x158] sm:$0xff]
      %v1031 = vld [vmem:[%s986 + $0x160] sm:$0xff]
      %v1032 = vld [vmem:[%s986 + $0x168] sm:$0xff]
      %v1033 = vld [vmem:[%s986 + $0x170] sm:$0xff]
      %v1034 = vld [vmem:[%s986 + $0x178] sm:$0xff]
      %1035 = vmatpush.msra.mxu0 0.0
      %1036 = vmatpush.msra.mxu0 0.0
      %1037 = vmatpush.msra.mxu0 0.0
      %1038 = vmatpush.msra.mxu0 0.0
      %1039 = vmatpush.msra.mxu0 0.0
      %1040 = vmatpush.msra.mxu0 0.0
      %1041 = vmatpush.msra.mxu0 0.0
      %1042 = vmatpush.msra.mxu0 0.0
      %1043 = vmatpush.msra.mxu0 0.0
      %1044 = vmatpush.msra.mxu0 0.0
      %1045 = vmatpush.msra.mxu0 0.0
      %1046 = vmatpush.msra.mxu0 0.0
      %1047 = vmatpush.msra.mxu0 0.0
      %1048 = vmatpush.msra.mxu0 0.0
      %1049 = vmatpush.msra.mxu0 %v985
      %1050 = vmatpush.msra.mxu0 %v984
      %1051 = vmatmul.f32.gmra.mxu0 %v406
      %v1052 = vpop.f32.mrf.mxu0
      %v1053 = vadd.f32 0.0, %v1052
      %1054 = vmatmul.f32.gmra.mxu0 %v409
      %v1055 = vpop.f32.mrf.mxu0
      %v1056 = vadd.f32 0.0, %v1055
      %1057 = vdwg.mxu0
      %1058 = vmatpush.msra.mxu0 0.0
      %1059 = vmatpush.msra.mxu0 0.0
      %1060 = vmatpush.msra.mxu0 0.0
      %1061 = vmatpush.msra.mxu0 0.0
      %1062 = vmatpush.msra.mxu0 0.0
      %1063 = vmatpush.msra.mxu0 0.0
      %1064 = vmatpush.msra.mxu0 0.0
      %1065 = vmatpush.msra.mxu0 0.0
      %1066 = vmatpush.msra.mxu0 0.0
      %1067 = vmatpush.msra.mxu0 0.0
      %1068 = vmatpush.msra.mxu0 0.0
      %1069 = vmatpush.msra.mxu0 0.0
      %1070 = vmatpush.msra.mxu0 0.0
      %1071 = vmatpush.msra.mxu0 0.0
      %1072 = vmatpush.msra.mxu0 %v985
      %1073 = vmatpush.msra.mxu0 %v984
      %1074 = vmatmul.f32.gmra.mxu0 %v458
      %v1075 = vpop.f32.mrf.mxu0
      %v1076 = vadd.f32 0.0, %v1075
      %1077 = vmatmul.f32.gmra.mxu0 %v461
      %v1078 = vpop.f32.mrf.mxu0
      %v1079 = vadd.f32 0.0, %v1078
      %1080 = vdwg.mxu0
      %v1081 = vld [vmem:[%s4 + $0x3] sm:$0x1]
      %v1082 = vperm.slane %v1081, 0
      %1083 = vmatpush.msra.mxu0 %v1002
      %1084 = vmatpush.msra.mxu0 %v1001
      %1085 = vmatpush.msra.mxu0 %v1000
      %1086 = vmatpush.msra.mxu0 %v999
      %1087 = vmatpush.msra.mxu0 %v998
      %1088 = vmatpush.msra.mxu0 %v997
      %1089 = vmatpush.msra.mxu0 %v996
      %1090 = vmatpush.msra.mxu0 %v995
      %1091 = vmatpush.msra.mxu0 %v994
      %1092 = vmatpush.msra.mxu0 %v993
      %1093 = vmatpush.msra.mxu0 %v992
      %1094 = vmatpush.msra.mxu0 %v991
      %1095 = vmatpush.msra.mxu0 %v990
      %1096 = vmatpush.msra.mxu0 %v989
      %1097 = vmatpush.msra.mxu0 %v988
      %1098 = vmatpush.msra.mxu0 %v987
      %1099 = vmatmul.f32.gmra.mxu0 %v1053
      %v1100 = vpop.f32.mrf.mxu0
      %v1101 = vadd.f32 %v1082, %v1100
      %1102 = vmatmul.f32.gmra.mxu0 %v1056
      %v1103 = vpop.f32.mrf.mxu0
      %v1104 = vadd.f32 %v1082, %v1103
      %1105 = vdwg.mxu0
      %1106 = vmatpush.msra.mxu0 %v1018
      %1107 = vmatpush.msra.mxu0 %v1017
      %1108 = vmatpush.msra.mxu0 %v1016
      %1109 = vmatpush.msra.mxu0 %v1015
      %1110 = vmatpush.msra.mxu0 %v1014
      %1111 = vmatpush.msra.mxu0 %v1013
      %1112 = vmatpush.msra.mxu0 %v1012
      %1113 = vmatpush.msra.mxu0 %v1011
      %1114 = vmatpush.msra.mxu0 %v1010
      %1115 = vmatpush.msra.mxu0 %v1009
      %1116 = vmatpush.msra.mxu0 %v1008
      %1117 = vmatpush.msra.mxu0 %v1007
      %1118 = vmatpush.msra.mxu0 %v1006
      %1119 = vmatpush.msra.mxu0 %v1005
      %1120 = vmatpush.msra.mxu0 %v1004
      %1121 = vmatpush.msra.mxu0 %v1003
      %1122 = vmatmul.f32.gmra.mxu0 %v984
      %v1123 = vpop.f32.mrf.mxu0
      %v1124 = vadd.f32 %v1101, %v1123
      %1125 = vmatmul.f32.gmra.mxu0 %v985
      %v1126 = vpop.f32.mrf.mxu0
      %v1127 = vadd.f32 %v1104, %v1126
      %1128 = vdwg.mxu0
      %1129 = vmatpush.msra.mxu0 %v1034
      %1130 = vmatpush.msra.mxu0 %v1033
      %1131 = vmatpush.msra.mxu0 %v1032
      %1132 = vmatpush.msra.mxu0 %v1031
      %1133 = vmatpush.msra.mxu0 %v1030
      %1134 = vmatpush.msra.mxu0 %v1029
      %1135 = vmatpush.msra.mxu0 %v1028
      %1136 = vmatpush.msra.mxu0 %v1027
      %1137 = vmatpush.msra.mxu0 %v1026
      %1138 = vmatpush.msra.mxu0 %v1025
      %1139 = vmatpush.msra.mxu0 %v1024
      %1140 = vmatpush.msra.mxu0 %v1023
      %1141 = vmatpush.msra.mxu0 %v1022
      %1142 = vmatpush.msra.mxu0 %v1021
      %1143 = vmatpush.msra.mxu0 %v1020
      %1144 = vmatpush.msra.mxu0 %v1019
      %1145 = vmatmul.f32.gmra.mxu0 %v1076
      %v1146 = vpop.f32.mrf.mxu0
      %v1147 = vadd.f32 %v1124, %v1146
      %1148 = vmatmul.f32.gmra.mxu0 %v1079
      %v1149 = vpop.f32.mrf.mxu0
      %v1150 = vadd.f32 %v1127, %v1149
      %1151 = vdwg.mxu0
      %v1152 = vmax.f32 %v1147, 0.0
      %v1153 = vmax.f32 %v1150, 0.0
      %s1154 = scalar_lea.vmem %s3, 1152
      %v1155 = vld [vmem:[%s1154] sm:$0xff]
      %v1156 = vld [vmem:[%s1154 + $0x8] sm:$0xff]
      %v1157 = vld [vmem:[%s1154 + $0x10] sm:$0xff]
      %v1158 = vld [vmem:[%s1154 + $0x18] sm:$0xff]
      %v1159 = vld [vmem:[%s1154 + $0x20] sm:$0xff]
      %v1160 = vld [vmem:[%s1154 + $0x28] sm:$0xff]
      %v1161 = vld [vmem:[%s1154 + $0x30] sm:$0xff]
      %v1162 = vld [vmem:[%s1154 + $0x38] sm:$0xff]
      %v1163 = vld [vmem:[%s1154 + $0x40] sm:$0xff]
      %v1164 = vld [vmem:[%s1154 + $0x48] sm:$0xff]
      %v1165 = vld [vmem:[%s1154 + $0x50] sm:$0xff]
      %v1166 = vld [vmem:[%s1154 + $0x58] sm:$0xff]
      %v1167 = vld [vmem:[%s1154 + $0x60] sm:$0xff]
      %v1168 = vld [vmem:[%s1154 + $0x68] sm:$0xff]
      %v1169 = vld [vmem:[%s1154 + $0x70] sm:$0xff]
      %v1170 = vld [vmem:[%s1154 + $0x78] sm:$0xff]
      %v1171 = vld [vmem:[%s1154 + $0x80] sm:$0xff]
      %v1172 = vld [vmem:[%s1154 + $0x88] sm:$0xff]
      %v1173 = vld [vmem:[%s1154 + $0x90] sm:$0xff]
      %v1174 = vld [vmem:[%s1154 + $0x98] sm:$0xff]
      %v1175 = vld [vmem:[%s1154 + $0xa0] sm:$0xff]
      %v1176 = vld [vmem:[%s1154 + $0xa8] sm:$0xff]
      %v1177 = vld [vmem:[%s1154 + $0xb0] sm:$0xff]
      %v1178 = vld [vmem:[%s1154 + $0xb8] sm:$0xff]
      %v1179 = vld [vmem:[%s1154 + $0xc0] sm:$0xff]
      %v1180 = vld [vmem:[%s1154 + $0xc8] sm:$0xff]
      %v1181 = vld [vmem:[%s1154 + $0xd0] sm:$0xff]
      %v1182 = vld [vmem:[%s1154 + $0xd8] sm:$0xff]
      %v1183 = vld [vmem:[%s1154 + $0xe0] sm:$0xff]
      %v1184 = vld [vmem:[%s1154 + $0xe8] sm:$0xff]
      %v1185 = vld [vmem:[%s1154 + $0xf0] sm:$0xff]
      %v1186 = vld [vmem:[%s1154 + $0xf8] sm:$0xff]
      %v1187 = vld [vmem:[%s1154 + $0x100] sm:$0xff]
      %v1188 = vld [vmem:[%s1154 + $0x108] sm:$0xff]
      %v1189 = vld [vmem:[%s1154 + $0x110] sm:$0xff]
      %v1190 = vld [vmem:[%s1154 + $0x118] sm:$0xff]
      %v1191 = vld [vmem:[%s1154 + $0x120] sm:$0xff]
      %v1192 = vld [vmem:[%s1154 + $0x128] sm:$0xff]
      %v1193 = vld [vmem:[%s1154 + $0x130] sm:$0xff]
      %v1194 = vld [vmem:[%s1154 + $0x138] sm:$0xff]
      %v1195 = vld [vmem:[%s1154 + $0x140] sm:$0xff]
      %v1196 = vld [vmem:[%s1154 + $0x148] sm:$0xff]
      %v1197 = vld [vmem:[%s1154 + $0x150] sm:$0xff]
      %v1198 = vld [vmem:[%s1154 + $0x158] sm:$0xff]
      %v1199 = vld [vmem:[%s1154 + $0x160] sm:$0xff]
      %v1200 = vld [vmem:[%s1154 + $0x168] sm:$0xff]
      %v1201 = vld [vmem:[%s1154 + $0x170] sm:$0xff]
      %v1202 = vld [vmem:[%s1154 + $0x178] sm:$0xff]
      %1203 = vmatpush.msra.mxu0 0.0
      %1204 = vmatpush.msra.mxu0 0.0
      %1205 = vmatpush.msra.mxu0 0.0
      %1206 = vmatpush.msra.mxu0 0.0
      %1207 = vmatpush.msra.mxu0 0.0
      %1208 = vmatpush.msra.mxu0 0.0
      %1209 = vmatpush.msra.mxu0 0.0
      %1210 = vmatpush.msra.mxu0 0.0
      %1211 = vmatpush.msra.mxu0 0.0
      %1212 = vmatpush.msra.mxu0 0.0
      %1213 = vmatpush.msra.mxu0 0.0
      %1214 = vmatpush.msra.mxu0 0.0
      %1215 = vmatpush.msra.mxu0 0.0
      %1216 = vmatpush.msra.mxu0 0.0
      %1217 = vmatpush.msra.mxu0 %v1153
      %1218 = vmatpush.msra.mxu0 %v1152
      %1219 = vmatmul.f32.gmra.mxu0 %v406
      %v1220 = vpop.f32.mrf.mxu0
      %v1221 = vadd.f32 0.0, %v1220
      %1222 = vmatmul.f32.gmra.mxu0 %v409
      %v1223 = vpop.f32.mrf.mxu0
      %v1224 = vadd.f32 0.0, %v1223
      %1225 = vdwg.mxu0
      %1226 = vmatpush.msra.mxu0 0.0
      %1227 = vmatpush.msra.mxu0 0.0
      %1228 = vmatpush.msra.mxu0 0.0
      %1229 = vmatpush.msra.mxu0 0.0
      %1230 = vmatpush.msra.mxu0 0.0
      %1231 = vmatpush.msra.mxu0 0.0
      %1232 = vmatpush.msra.mxu0 0.0
      %1233 = vmatpush.msra.mxu0 0.0
      %1234 = vmatpush.msra.mxu0 0.0
      %1235 = vmatpush.msra.mxu0 0.0
      %1236 = vmatpush.msra.mxu0 0.0
      %1237 = vmatpush.msra.mxu0 0.0
      %1238 = vmatpush.msra.mxu0 0.0
      %1239 = vmatpush.msra.mxu0 0.0
      %1240 = vmatpush.msra.mxu0 %v1153
      %1241 = vmatpush.msra.mxu0 %v1152
      %1242 = vmatmul.f32.gmra.mxu0 %v458
      %v1243 = vpop.f32.mrf.mxu0
      %v1244 = vadd.f32 0.0, %v1243
      %1245 = vmatmul.f32.gmra.mxu0 %v461
      %v1246 = vpop.f32.mrf.mxu0
      %v1247 = vadd.f32 0.0, %v1246
      %1248 = vdwg.mxu0
      %v1249 = vld [vmem:[%s4 + $0x4] sm:$0x1]
      %v1250 = vperm.slane %v1249, 0
      %1251 = vmatpush.msra.mxu0 %v1170
      %1252 = vmatpush.msra.mxu0 %v1169
      %1253 = vmatpush.msra.mxu0 %v1168
      %1254 = vmatpush.msra.mxu0 %v1167
      %1255 = vmatpush.msra.mxu0 %v1166
      %1256 = vmatpush.msra.mxu0 %v1165
      %1257 = vmatpush.msra.mxu0 %v1164
      %1258 = vmatpush.msra.mxu0 %v1163
      %1259 = vmatpush.msra.mxu0 %v1162
      %1260 = vmatpush.msra.mxu0 %v1161
      %1261 = vmatpush.msra.mxu0 %v1160
      %1262 = vmatpush.msra.mxu0 %v1159
      %1263 = vmatpush.msra.mxu0 %v1158
      %1264 = vmatpush.msra.mxu0 %v1157
      %1265 = vmatpush.msra.mxu0 %v1156
      %1266 = vmatpush.msra.mxu0 %v1155
      %1267 = vmatmul.f32.gmra.mxu0 %v1221
      %v1268 = vpop.f32.mrf.mxu0
      %v1269 = vadd.f32 %v1250, %v1268
      %1270 = vmatmul.f32.gmra.mxu0 %v1224
      %v1271 = vpop.f32.mrf.mxu0
      %v1272 = vadd.f32 %v1250, %v1271
      %1273 = vdwg.mxu0
      %1274 = vmatpush.msra.mxu0 %v1186
      %1275 = vmatpush.msra.mxu0 %v1185
      %1276 = vmatpush.msra.mxu0 %v1184
      %1277 = vmatpush.msra.mxu0 %v1183
      %1278 = vmatpush.msra.mxu0 %v1182
      %1279 = vmatpush.msra.mxu0 %v1181
      %1280 = vmatpush.msra.mxu0 %v1180
      %1281 = vmatpush.msra.mxu0 %v1179
      %1282 = vmatpush.msra.mxu0 %v1178
      %1283 = vmatpush.msra.mxu0 %v1177
      %1284 = vmatpush.msra.mxu0 %v1176
      %1285 = vmatpush.msra.mxu0 %v1175
      %1286 = vmatpush.msra.mxu0 %v1174
      %1287 = vmatpush.msra.mxu0 %v1173
      %1288 = vmatpush.msra.mxu0 %v1172
      %1289 = vmatpush.msra.mxu0 %v1171
      %1290 = vmatmul.f32.gmra.mxu0 %v1152
      %v1291 = vpop.f32.mrf.mxu0
      %v1292 = vadd.f32 %v1269, %v1291
      %1293 = vmatmul.f32.gmra.mxu0 %v1153
      %v1294 = vpop.f32.mrf.mxu0
      %v1295 = vadd.f32 %v1272, %v1294
      %1296 = vdwg.mxu0
      %1297 = vmatpush.msra.mxu0 %v1202
      %1298 = vmatpush.msra.mxu0 %v1201
      %1299 = vmatpush.msra.mxu0 %v1200
      %1300 = vmatpush.msra.mxu0 %v1199
      %1301 = vmatpush.msra.mxu0 %v1198
      %1302 = vmatpush.msra.mxu0 %v1197
      %1303 = vmatpush.msra.mxu0 %v1196
      %1304 = vmatpush.msra.mxu0 %v1195
      %1305 = vmatpush.msra.mxu0 %v1194
      %1306 = vmatpush.msra.mxu0 %v1193
      %1307 = vmatpush.msra.mxu0 %v1192
      %1308 = vmatpush.msra.mxu0 %v1191
      %1309 = vmatpush.msra.mxu0 %v1190
      %1310 = vmatpush.msra.mxu0 %v1189
      %1311 = vmatpush.msra.mxu0 %v1188
      %1312 = vmatpush.msra.mxu0 %v1187
      %1313 = vmatmul.f32.gmra.mxu0 %v1244
      %v1314 = vpop.f32.mrf.mxu0
      %v1315 = vadd.f32 %v1292, %v1314
      %1316 = vmatmul.f32.gmra.mxu0 %v1247
      %v1317 = vpop.f32.mrf.mxu0
      %v1318 = vadd.f32 %v1295, %v1317
      %1319 = vdwg.mxu0
      %v1320 = vadd.f32 %v1315, %v984
      %v1321 = vadd.f32 %v1318, %v985
      %v1322 = vmax.f32 %v1320, 0.0
      %v1323 = vmax.f32 %v1321, 0.0
      %s1324 = scalar_lea.vmem %s3, 1536
      %v1325 = vld [vmem:[%s1324] sm:$0xff]
      %v1326 = vld [vmem:[%s1324 + $0x8] sm:$0xff]
      %v1327 = vld [vmem:[%s1324 + $0x10] sm:$0xff]
      %v1328 = vld [vmem:[%s1324 + $0x18] sm:$0xff]
      %v1329 = vld [vmem:[%s1324 + $0x20] sm:$0xff]
      %v1330 = vld [vmem:[%s1324 + $0x28] sm:$0xff]
      %v1331 = vld [vmem:[%s1324 + $0x30] sm:$0xff]
      %v1332 = vld [vmem:[%s1324 + $0x38] sm:$0xff]
      %v1333 = vld [vmem:[%s1324 + $0x40] sm:$0xff]
      %v1334 = vld [vmem:[%s1324 + $0x48] sm:$0xff]
      %v1335 = vld [vmem:[%s1324 + $0x50] sm:$0xff]
      %v1336 = vld [vmem:[%s1324 + $0x58] sm:$0xff]
      %v1337 = vld [vmem:[%s1324 + $0x60] sm:$0xff]
      %v1338 = vld [vmem:[%s1324 + $0x68] sm:$0xff]
      %v1339 = vld [vmem:[%s1324 + $0x70] sm:$0xff]
      %v1340 = vld [vmem:[%s1324 + $0x78] sm:$0xff]
      %v1341 = vld [vmem:[%s1324 + $0x80] sm:$0xff]
      %v1342 = vld [vmem:[%s1324 + $0x88] sm:$0xff]
      %v1343 = vld [vmem:[%s1324 + $0x90] sm:$0xff]
      %v1344 = vld [vmem:[%s1324 + $0x98] sm:$0xff]
      %v1345 = vld [vmem:[%s1324 + $0xa0] sm:$0xff]
      %v1346 = vld [vmem:[%s1324 + $0xa8] sm:$0xff]
      %v1347 = vld [vmem:[%s1324 + $0xb0] sm:$0xff]
      %v1348 = vld [vmem:[%s1324 + $0xb8] sm:$0xff]
      %v1349 = vld [vmem:[%s1324 + $0xc0] sm:$0xff]
      %v1350 = vld [vmem:[%s1324 + $0xc8] sm:$0xff]
      %v1351 = vld [vmem:[%s1324 + $0xd0] sm:$0xff]
      %v1352 = vld [vmem:[%s1324 + $0xd8] sm:$0xff]
      %v1353 = vld [vmem:[%s1324 + $0xe0] sm:$0xff]
      %v1354 = vld [vmem:[%s1324 + $0xe8] sm:$0xff]
      %v1355 = vld [vmem:[%s1324 + $0xf0] sm:$0xff]
      %v1356 = vld [vmem:[%s1324 + $0xf8] sm:$0xff]
      %v1357 = vld [vmem:[%s1324 + $0x100] sm:$0xff]
      %v1358 = vld [vmem:[%s1324 + $0x108] sm:$0xff]
      %v1359 = vld [vmem:[%s1324 + $0x110] sm:$0xff]
      %v1360 = vld [vmem:[%s1324 + $0x118] sm:$0xff]
      %v1361 = vld [vmem:[%s1324 + $0x120] sm:$0xff]
      %v1362 = vld [vmem:[%s1324 + $0x128] sm:$0xff]
      %v1363 = vld [vmem:[%s1324 + $0x130] sm:$0xff]
      %v1364 = vld [vmem:[%s1324 + $0x138] sm:$0xff]
      %v1365 = vld [vmem:[%s1324 + $0x140] sm:$0xff]
      %v1366 = vld [vmem:[%s1324 + $0x148] sm:$0xff]
      %v1367 = vld [vmem:[%s1324 + $0x150] sm:$0xff]
      %v1368 = vld [vmem:[%s1324 + $0x158] sm:$0xff]
      %v1369 = vld [vmem:[%s1324 + $0x160] sm:$0xff]
      %v1370 = vld [vmem:[%s1324 + $0x168] sm:$0xff]
      %v1371 = vld [vmem:[%s1324 + $0x170] sm:$0xff]
      %v1372 = vld [vmem:[%s1324 + $0x178] sm:$0xff]
      %1373 = vmatpush.msra.mxu0 0.0
      %1374 = vmatpush.msra.mxu0 0.0
      %1375 = vmatpush.msra.mxu0 0.0
      %1376 = vmatpush.msra.mxu0 0.0
      %1377 = vmatpush.msra.mxu0 0.0
      %1378 = vmatpush.msra.mxu0 0.0
      %1379 = vmatpush.msra.mxu0 0.0
      %1380 = vmatpush.msra.mxu0 0.0
      %1381 = vmatpush.msra.mxu0 0.0
      %1382 = vmatpush.msra.mxu0 0.0
      %1383 = vmatpush.msra.mxu0 0.0
      %1384 = vmatpush.msra.mxu0 0.0
      %1385 = vmatpush.msra.mxu0 0.0
      %1386 = vmatpush.msra.mxu0 0.0
      %1387 = vmatpush.msra.mxu0 %v1323
      %1388 = vmatpush.msra.mxu0 %v1322
      %1389 = vmatmul.f32.gmra.mxu0 %v406
      %v1390 = vpop.f32.mrf.mxu0
      %v1391 = vadd.f32 0.0, %v1390
      %1392 = vmatmul.f32.gmra.mxu0 %v409
      %v1393 = vpop.f32.mrf.mxu0
      %v1394 = vadd.f32 0.0, %v1393
      %1395 = vdwg.mxu0
      %1396 = vmatpush.msra.mxu0 0.0
      %1397 = vmatpush.msra.mxu0 0.0
      %1398 = vmatpush.msra.mxu0 0.0
      %1399 = vmatpush.msra.mxu0 0.0
      %1400 = vmatpush.msra.mxu0 0.0
      %1401 = vmatpush.msra.mxu0 0.0
      %1402 = vmatpush.msra.mxu0 0.0
      %1403 = vmatpush.msra.mxu0 0.0
      %1404 = vmatpush.msra.mxu0 0.0
      %1405 = vmatpush.msra.mxu0 0.0
      %1406 = vmatpush.msra.mxu0 0.0
      %1407 = vmatpush.msra.mxu0 0.0
      %1408 = vmatpush.msra.mxu0 0.0
      %1409 = vmatpush.msra.mxu0 0.0
      %1410 = vmatpush.msra.mxu0 %v1323
      %1411 = vmatpush.msra.mxu0 %v1322
      %1412 = vmatmul.f32.gmra.mxu0 %v458
      %v1413 = vpop.f32.mrf.mxu0
      %v1414 = vadd.f32 0.0, %v1413
      %1415 = vmatmul.f32.gmra.mxu0 %v461
      %v1416 = vpop.f32.mrf.mxu0
      %v1417 = vadd.f32 0.0, %v1416
      %1418 = vdwg.mxu0
      %v1419 = vld [vmem:[%s4 + $0x5] sm:$0x1]
      %v1420 = vperm.slane %v1419, 0
      %1421 = vmatpush.msra.mxu0 %v1340
      %1422 = vmatpush.msra.mxu0 %v1339
      %1423 = vmatpush.msra.mxu0 %v1338
      %1424 = vmatpush.msra.mxu0 %v1337
      %1425 = vmatpush.msra.mxu0 %v1336
      %1426 = vmatpush.msra.mxu0 %v1335
      %1427 = vmatpush.msra.mxu0 %v1334
      %1428 = vmatpush.msra.mxu0 %v1333
      %1429 = vmatpush.msra.mxu0 %v1332
      %1430 = vmatpush.msra.mxu0 %v1331
      %1431 = vmatpush.msra.mxu0 %v1330
      %1432 = vmatpush.msra.mxu0 %v1329
      %1433 = vmatpush.msra.mxu0 %v1328
      %1434 = vmatpush.msra.mxu0 %v1327
      %1435 = vmatpush.msra.mxu0 %v1326
      %1436 = vmatpush.msra.mxu0 %v1325
      %1437 = vmatmul.f32.gmra.mxu0 %v1391
      %v1438 = vpop.f32.mrf.mxu0
      %v1439 = vadd.f32 %v1420, %v1438
      %1440 = vmatmul.f32.gmra.mxu0 %v1394
      %v1441 = vpop.f32.mrf.mxu0
      %v1442 = vadd.f32 %v1420, %v1441
      %1443 = vdwg.mxu0
      %1444 = vmatpush.msra.mxu0 %v1356
      %1445 = vmatpush.msra.mxu0 %v1355
      %1446 = vmatpush.msra.mxu0 %v1354
      %1447 = vmatpush.msra.mxu0 %v1353
      %1448 = vmatpush.msra.mxu0 %v1352
      %1449 = vmatpush.msra.mxu0 %v1351
      %1450 = vmatpush.msra.mxu0 %v1350
      %1451 = vmatpush.msra.mxu0 %v1349
      %1452 = vmatpush.msra.mxu0 %v1348
      %1453 = vmatpush.msra.mxu0 %v1347
      %1454 = vmatpush.msra.mxu0 %v1346
      %1455 = vmatpush.msra.mxu0 %v1345
      %1456 = vmatpush.msra.mxu0 %v1344
      %1457 = vmatpush.msra.mxu0 %v1343
      %1458 = vmatpush.msra.mxu0 %v1342
      %1459 = vmatpush.msra.mxu0 %v1341
      %1460 = vmatmul.f32.gmra.mxu0 %v1322
      %v1461 = vpop.f32.mrf.mxu0
      %v1462 = vadd.f32 %v1439, %v1461
      %1463 = vmatmul.f32.gmra.mxu0 %v1323
      %v1464 = vpop.f32.mrf.mxu0
      %v1465 = vadd.f32 %v1442, %v1464
      %1466 = vdwg.mxu0
      %1467 = vmatpush.msra.mxu0 %v1372
      %1468 = vmatpush.msra.mxu0 %v1371
      %1469 = vmatpush.msra.mxu0 %v1370
      %1470 = vmatpush.msra.mxu0 %v1369
      %1471 = vmatpush.msra.mxu0 %v1368
      %1472 = vmatpush.msra.mxu0 %v1367
      %1473 = vmatpush.msra.mxu0 %v1366
      %1474 = vmatpush.msra.mxu0 %v1365
      %1475 = vmatpush.msra.mxu0 %v1364
      %1476 = vmatpush.msra.mxu0 %v1363
      %1477 = vmatpush.msra.mxu0 %v1362
      %1478 = vmatpush.msra.mxu0 %v1361
      %1479 = vmatpush.msra.mxu0 %v1360
      %1480 = vmatpush.msra.mxu0 %v1359
      %1481 = vmatpush.msra.mxu0 %v1358
      %1482 = vmatpush.msra.mxu0 %v1357
      %1483 = vmatmul.f32.gmra.mxu0 %v1414
      %v1484 = vpop.f32.mrf.mxu0
      %v1485 = vadd.f32 %v1462, %v1484
      %1486 = vmatmul.f32.gmra.mxu0 %v1417
      %v1487 = vpop.f32.mrf.mxu0
      %v1488 = vadd.f32 %v1465, %v1487
      %1489 = vdwg.mxu0
      %v1490 = vadd.f32 %v1485, %v816
      %v1491 = vadd.f32 %v1488, %v817
      %v1492 = vmax.f32 %v1490, 0.0
      %v1493 = vmax.f32 %v1491, 0.0
      %s1494 = scalar_lea.vmem %s3, 1920
      %v1495 = vld [vmem:[%s1494] sm:$0xff]
      %v1496 = vld [vmem:[%s1494 + $0x8] sm:$0xff]
      %v1497 = vld [vmem:[%s1494 + $0x10] sm:$0xff]
      %v1498 = vld [vmem:[%s1494 + $0x18] sm:$0xff]
      %v1499 = vld [vmem:[%s1494 + $0x20] sm:$0xff]
      %v1500 = vld [vmem:[%s1494 + $0x28] sm:$0xff]
      %v1501 = vld [vmem:[%s1494 + $0x30] sm:$0xff]
      %v1502 = vld [vmem:[%s1494 + $0x38] sm:$0xff]
      %v1503 = vld [vmem:[%s1494 + $0x40] sm:$0xff]
      %v1504 = vld [vmem:[%s1494 + $0x48] sm:$0xff]
      %v1505 = vld [vmem:[%s1494 + $0x50] sm:$0xff]
      %v1506 = vld [vmem:[%s1494 + $0x58] sm:$0xff]
      %v1507 = vld [vmem:[%s1494 + $0x60] sm:$0xff]
      %v1508 = vld [vmem:[%s1494 + $0x68] sm:$0xff]
      %v1509 = vld [vmem:[%s1494 + $0x70] sm:$0xff]
      %v1510 = vld [vmem:[%s1494 + $0x78] sm:$0xff]
      %v1511 = vld [vmem:[%s1494 + $0x80] sm:$0xff]
      %v1512 = vld [vmem:[%s1494 + $0x88] sm:$0xff]
      %v1513 = vld [vmem:[%s1494 + $0x90] sm:$0xff]
      %v1514 = vld [vmem:[%s1494 + $0x98] sm:$0xff]
      %v1515 = vld [vmem:[%s1494 + $0xa0] sm:$0xff]
      %v1516 = vld [vmem:[%s1494 + $0xa8] sm:$0xff]
      %v1517 = vld [vmem:[%s1494 + $0xb0] sm:$0xff]
      %v1518 = vld [vmem:[%s1494 + $0xb8] sm:$0xff]
      %v1519 = vld [vmem:[%s1494 + $0xc0] sm:$0xff]
      %v1520 = vld [vmem:[%s1494 + $0xc8] sm:$0xff]
      %v1521 = vld [vmem:[%s1494 + $0xd0] sm:$0xff]
      %v1522 = vld [vmem:[%s1494 + $0xd8] sm:$0xff]
      %v1523 = vld [vmem:[%s1494 + $0xe0] sm:$0xff]
      %v1524 = vld [vmem:[%s1494 + $0xe8] sm:$0xff]
      %v1525 = vld [vmem:[%s1494 + $0xf0] sm:$0xff]
      %v1526 = vld [vmem:[%s1494 + $0xf8] sm:$0xff]
      %v1527 = vld [vmem:[%s1494 + $0x100] sm:$0xff]
      %v1528 = vld [vmem:[%s1494 + $0x108] sm:$0xff]
      %v1529 = vld [vmem:[%s1494 + $0x110] sm:$0xff]
      %v1530 = vld [vmem:[%s1494 + $0x118] sm:$0xff]
      %v1531 = vld [vmem:[%s1494 + $0x120] sm:$0xff]
      %v1532 = vld [vmem:[%s1494 + $0x128] sm:$0xff]
      %v1533 = vld [vmem:[%s1494 + $0x130] sm:$0xff]
      %v1534 = vld [vmem:[%s1494 + $0x138] sm:$0xff]
      %v1535 = vld [vmem:[%s1494 + $0x140] sm:$0xff]
      %v1536 = vld [vmem:[%s1494 + $0x148] sm:$0xff]
      %v1537 = vld [vmem:[%s1494 + $0x150] sm:$0xff]
      %v1538 = vld [vmem:[%s1494 + $0x158] sm:$0xff]
      %v1539 = vld [vmem:[%s1494 + $0x160] sm:$0xff]
      %v1540 = vld [vmem:[%s1494 + $0x168] sm:$0xff]
      %v1541 = vld [vmem:[%s1494 + $0x170] sm:$0xff]
      %v1542 = vld [vmem:[%s1494 + $0x178] sm:$0xff]
      %1543 = vmatpush.msra.mxu0 0.0
      %1544 = vmatpush.msra.mxu0 0.0
      %1545 = vmatpush.msra.mxu0 0.0
      %1546 = vmatpush.msra.mxu0 0.0
      %1547 = vmatpush.msra.mxu0 0.0
      %1548 = vmatpush.msra.mxu0 0.0
      %1549 = vmatpush.msra.mxu0 0.0
      %1550 = vmatpush.msra.mxu0 0.0
      %1551 = vmatpush.msra.mxu0 0.0
      %1552 = vmatpush.msra.mxu0 0.0
      %1553 = vmatpush.msra.mxu0 0.0
      %1554 = vmatpush.msra.mxu0 0.0
      %1555 = vmatpush.msra.mxu0 0.0
      %1556 = vmatpush.msra.mxu0 0.0
      %1557 = vmatpush.msra.mxu0 %v1493
      %1558 = vmatpush.msra.mxu0 %v1492
      %1559 = vmatmul.f32.gmra.mxu0 %v406
      %v1560 = vpop.f32.mrf.mxu0
      %v1561 = vadd.f32 0.0, %v1560
      %1562 = vmatmul.f32.gmra.mxu0 %v409
      %v1563 = vpop.f32.mrf.mxu0
      %v1564 = vadd.f32 0.0, %v1563
      %1565 = vdwg.mxu0
      %1566 = vmatpush.msra.mxu0 0.0
      %1567 = vmatpush.msra.mxu0 0.0
      %1568 = vmatpush.msra.mxu0 0.0
      %1569 = vmatpush.msra.mxu0 0.0
      %1570 = vmatpush.msra.mxu0 0.0
      %1571 = vmatpush.msra.mxu0 0.0
      %1572 = vmatpush.msra.mxu0 0.0
      %1573 = vmatpush.msra.mxu0 0.0
      %1574 = vmatpush.msra.mxu0 0.0
      %1575 = vmatpush.msra.mxu0 0.0
      %1576 = vmatpush.msra.mxu0 0.0
      %1577 = vmatpush.msra.mxu0 0.0
      %1578 = vmatpush.msra.mxu0 0.0
      %1579 = vmatpush.msra.mxu0 0.0
      %1580 = vmatpush.msra.mxu0 %v1493
      %1581 = vmatpush.msra.mxu0 %v1492
      %1582 = vmatmul.f32.gmra.mxu0 %v458
      %v1583 = vpop.f32.mrf.mxu0
      %v1584 = vadd.f32 0.0, %v1583
      %1585 = vmatmul.f32.gmra.mxu0 %v461
      %v1586 = vpop.f32.mrf.mxu0
      %v1587 = vadd.f32 0.0, %v1586
      %1588 = vdwg.mxu0
      %v1589 = vld [vmem:[%s4 + $0x6] sm:$0x1]
      %v1590 = vperm.slane %v1589, 0
      %1591 = vmatpush.msra.mxu0 %v1510
      %1592 = vmatpush.msra.mxu0 %v1509
      %1593 = vmatpush.msra.mxu0 %v1508
      %1594 = vmatpush.msra.mxu0 %v1507
      %1595 = vmatpush.msra.mxu0 %v1506
      %1596 = vmatpush.msra.mxu0 %v1505
      %1597 = vmatpush.msra.mxu0 %v1504
      %1598 = vmatpush.msra.mxu0 %v1503
      %1599 = vmatpush.msra.mxu0 %v1502
      %1600 = vmatpush.msra.mxu0 %v1501
      %1601 = vmatpush.msra.mxu0 %v1500
      %1602 = vmatpush.msra.mxu0 %v1499
      %1603 = vmatpush.msra.mxu0 %v1498
      %1604 = vmatpush.msra.mxu0 %v1497
      %1605 = vmatpush.msra.mxu0 %v1496
      %1606 = vmatpush.msra.mxu0 %v1495
      %1607 = vmatmul.f32.gmra.mxu0 %v1561
      %v1608 = vpop.f32.mrf.mxu0
      %v1609 = vadd.f32 %v1590, %v1608
      %1610 = vmatmul.f32.gmra.mxu0 %v1564
      %v1611 = vpop.f32.mrf.mxu0
      %v1612 = vadd.f32 %v1590, %v1611
      %1613 = vdwg.mxu0
      %1614 = vmatpush.msra.mxu0 %v1526
      %1615 = vmatpush.msra.mxu0 %v1525
      %1616 = vmatpush.msra.mxu0 %v1524
      %1617 = vmatpush.msra.mxu0 %v1523
      %1618 = vmatpush.msra.mxu0 %v1522
      %1619 = vmatpush.msra.mxu0 %v1521
      %1620 = vmatpush.msra.mxu0 %v1520
      %1621 = vmatpush.msra.mxu0 %v1519
      %1622 = vmatpush.msra.mxu0 %v1518
      %1623 = vmatpush.msra.mxu0 %v1517
      %1624 = vmatpush.msra.mxu0 %v1516
      %1625 = vmatpush.msra.mxu0 %v1515
      %1626 = vmatpush.msra.mxu0 %v1514
      %1627 = vmatpush.msra.mxu0 %v1513
      %1628 = vmatpush.msra.mxu0 %v1512
      %1629 = vmatpush.msra.mxu0 %v1511
      %1630 = vmatmul.f32.gmra.mxu0 %v1492
      %v1631 = vpop.f32.mrf.mxu0
      %v1632 = vadd.f32 %v1609, %v1631
      %1633 = vmatmul.f32.gmra.mxu0 %v1493
      %v1634 = vpop.f32.mrf.mxu0
      %v1635 = vadd.f32 %v1612, %v1634
      %1636 = vdwg.mxu0
      %1637 = vmatpush.msra.mxu0 %v1542
      %1638 = vmatpush.msra.mxu0 %v1541
      %1639 = vmatpush.msra.mxu0 %v1540
      %1640 = vmatpush.msra.mxu0 %v1539
      %1641 = vmatpush.msra.mxu0 %v1538
      %1642 = vmatpush.msra.mxu0 %v1537
      %1643 = vmatpush.msra.mxu0 %v1536
      %1644 = vmatpush.msra.mxu0 %v1535
      %1645 = vmatpush.msra.mxu0 %v1534
      %1646 = vmatpush.msra.mxu0 %v1533
      %1647 = vmatpush.msra.mxu0 %v1532
      %1648 = vmatpush.msra.mxu0 %v1531
      %1649 = vmatpush.msra.mxu0 %v1530
      %1650 = vmatpush.msra.mxu0 %v1529
      %1651 = vmatpush.msra.mxu0 %v1528
      %1652 = vmatpush.msra.mxu0 %v1527
      %1653 = vmatmul.f32.gmra.mxu0 %v1584
      %v1654 = vpop.f32.mrf.mxu0
      %v1655 = vadd.f32 %v1632, %v1654
      %1656 = vmatmul.f32.gmra.mxu0 %v1587
      %v1657 = vpop.f32.mrf.mxu0
      %v1658 = vadd.f32 %v1635, %v1657
      %1659 = vdwg.mxu0
      %v1660 = vadd.f32 %v1655, %v649
      %v1661 = vadd.f32 %v1658, %v650
      %v1662 = vmax.f32 %v1660, 0.0
      %v1663 = vmax.f32 %v1661, 0.0
      %s1664 = scalar_lea.vmem %s3, 2304
      %v1665 = vld [vmem:[%s1664] sm:$0xff]
      %v1666 = vld [vmem:[%s1664 + $0x8] sm:$0xff]
      %v1667 = vld [vmem:[%s1664 + $0x10] sm:$0xff]
      %v1668 = vld [vmem:[%s1664 + $0x18] sm:$0xff]
      %v1669 = vld [vmem:[%s1664 + $0x20] sm:$0xff]
      %v1670 = vld [vmem:[%s1664 + $0x28] sm:$0xff]
      %v1671 = vld [vmem:[%s1664 + $0x30] sm:$0xff]
      %v1672 = vld [vmem:[%s1664 + $0x38] sm:$0xff]
      %v1673 = vld [vmem:[%s1664 + $0x40] sm:$0xff]
      %v1674 = vld [vmem:[%s1664 + $0x48] sm:$0xff]
      %v1675 = vld [vmem:[%s1664 + $0x50] sm:$0xff]
      %v1676 = vld [vmem:[%s1664 + $0x58] sm:$0xff]
      %v1677 = vld [vmem:[%s1664 + $0x60] sm:$0xff]
      %v1678 = vld [vmem:[%s1664 + $0x68] sm:$0xff]
      %v1679 = vld [vmem:[%s1664 + $0x70] sm:$0xff]
      %v1680 = vld [vmem:[%s1664 + $0x78] sm:$0xff]
      %v1681 = vld [vmem:[%s1664 + $0x80] sm:$0xff]
      %v1682 = vld [vmem:[%s1664 + $0x88] sm:$0xff]
      %v1683 = vld [vmem:[%s1664 + $0x90] sm:$0xff]
      %v1684 = vld [vmem:[%s1664 + $0x98] sm:$0xff]
      %v1685 = vld [vmem:[%s1664 + $0xa0] sm:$0xff]
      %v1686 = vld [vmem:[%s1664 + $0xa8] sm:$0xff]
      %v1687 = vld [vmem:[%s1664 + $0xb0] sm:$0xff]
      %v1688 = vld [vmem:[%s1664 + $0xb8] sm:$0xff]
      %v1689 = vld [vmem:[%s1664 + $0xc0] sm:$0xff]
      %v1690 = vld [vmem:[%s1664 + $0xc8] sm:$0xff]
      %v1691 = vld [vmem:[%s1664 + $0xd0] sm:$0xff]
      %v1692 = vld [vmem:[%s1664 + $0xd8] sm:$0xff]
      %v1693 = vld [vmem:[%s1664 + $0xe0] sm:$0xff]
      %v1694 = vld [vmem:[%s1664 + $0xe8] sm:$0xff]
      %v1695 = vld [vmem:[%s1664 + $0xf0] sm:$0xff]
      %v1696 = vld [vmem:[%s1664 + $0xf8] sm:$0xff]
      %v1697 = vld [vmem:[%s1664 + $0x100] sm:$0xff]
      %v1698 = vld [vmem:[%s1664 + $0x108] sm:$0xff]
      %v1699 = vld [vmem:[%s1664 + $0x110] sm:$0xff]
      %v1700 = vld [vmem:[%s1664 + $0x118] sm:$0xff]
      %v1701 = vld [vmem:[%s1664 + $0x120] sm:$0xff]
      %v1702 = vld [vmem:[%s1664 + $0x128] sm:$0xff]
      %v1703 = vld [vmem:[%s1664 + $0x130] sm:$0xff]
      %v1704 = vld [vmem:[%s1664 + $0x138] sm:$0xff]
      %v1705 = vld [vmem:[%s1664 + $0x140] sm:$0xff]
      %v1706 = vld [vmem:[%s1664 + $0x148] sm:$0xff]
      %v1707 = vld [vmem:[%s1664 + $0x150] sm:$0xff]
      %v1708 = vld [vmem:[%s1664 + $0x158] sm:$0xff]
      %v1709 = vld [vmem:[%s1664 + $0x160] sm:$0xff]
      %v1710 = vld [vmem:[%s1664 + $0x168] sm:$0xff]
      %v1711 = vld [vmem:[%s1664 + $0x170] sm:$0xff]
      %v1712 = vld [vmem:[%s1664 + $0x178] sm:$0xff]
      %1713 = vmatpush.msra.mxu0 0.0
      %1714 = vmatpush.msra.mxu0 0.0
      %1715 = vmatpush.msra.mxu0 0.0
      %1716 = vmatpush.msra.mxu0 0.0
      %1717 = vmatpush.msra.mxu0 0.0
      %1718 = vmatpush.msra.mxu0 0.0
      %1719 = vmatpush.msra.mxu0 0.0
      %1720 = vmatpush.msra.mxu0 0.0
      %1721 = vmatpush.msra.mxu0 0.0
      %1722 = vmatpush.msra.mxu0 0.0
      %1723 = vmatpush.msra.mxu0 0.0
      %1724 = vmatpush.msra.mxu0 0.0
      %1725 = vmatpush.msra.mxu0 0.0
      %1726 = vmatpush.msra.mxu0 0.0
      %1727 = vmatpush.msra.mxu0 %v1663
      %1728 = vmatpush.msra.mxu0 %v1662
      %1729 = vmatmul.f32.gmra.mxu0 %v406
      %v1730 = vpop.f32.mrf.mxu0
      %v1731 = vadd.f32 0.0, %v1730
      %1732 = vmatmul.f32.gmra.mxu0 %v409
      %v1733 = vpop.f32.mrf.mxu0
      %v1734 = vadd.f32 0.0, %v1733
      %1735 = vdwg.mxu0
      %1736 = vmatpush.msra.mxu0 0.0
      %1737 = vmatpush.msra.mxu0 0.0
      %1738 = vmatpush.msra.mxu0 0.0
      %1739 = vmatpush.msra.mxu0 0.0
      %1740 = vmatpush.msra.mxu0 0.0
      %1741 = vmatpush.msra.mxu0 0.0
      %1742 = vmatpush.msra.mxu0 0.0
      %1743 = vmatpush.msra.mxu0 0.0
      %1744 = vmatpush.msra.mxu0 0.0
      %1745 = vmatpush.msra.mxu0 0.0
      %1746 = vmatpush.msra.mxu0 0.0
      %1747 = vmatpush.msra.mxu0 0.0
      %1748 = vmatpush.msra.mxu0 0.0
      %1749 = vmatpush.msra.mxu0 0.0
      %1750 = vmatpush.msra.mxu0 %v1663
      %1751 = vmatpush.msra.mxu0 %v1662
      %1752 = vmatmul.f32.gmra.mxu0 %v458
      %v1753 = vpop.f32.mrf.mxu0
      %v1754 = vadd.f32 0.0, %v1753
      %1755 = vmatmul.f32.gmra.mxu0 %v461
      %v1756 = vpop.f32.mrf.mxu0
      %v1757 = vadd.f32 0.0, %v1756
      %1758 = vdwg.mxu0
      %v1759 = vld [vmem:[%s4 + $0x7] sm:$0x1]
      %v1760 = vperm.slane %v1759, 0
      %1761 = vmatpush.msra.mxu0 %v1680
      %1762 = vmatpush.msra.mxu0 %v1679
      %1763 = vmatpush.msra.mxu0 %v1678
      %1764 = vmatpush.msra.mxu0 %v1677
      %1765 = vmatpush.msra.mxu0 %v1676
      %1766 = vmatpush.msra.mxu0 %v1675
      %1767 = vmatpush.msra.mxu0 %v1674
      %1768 = vmatpush.msra.mxu0 %v1673
      %1769 = vmatpush.msra.mxu0 %v1672
      %1770 = vmatpush.msra.mxu0 %v1671
      %1771 = vmatpush.msra.mxu0 %v1670
      %1772 = vmatpush.msra.mxu0 %v1669
      %1773 = vmatpush.msra.mxu0 %v1668
      %1774 = vmatpush.msra.mxu0 %v1667
      %1775 = vmatpush.msra.mxu0 %v1666
      %1776 = vmatpush.msra.mxu0 %v1665
      %1777 = vmatmul.f32.gmra.mxu0 %v1731
      %v1778 = vpop.f32.mrf.mxu0
      %v1779 = vadd.f32 %v1760, %v1778
      %1780 = vmatmul.f32.gmra.mxu0 %v1734
      %v1781 = vpop.f32.mrf.mxu0
      %v1782 = vadd.f32 %v1760, %v1781
      %1783 = vdwg.mxu0
      %1784 = vmatpush.msra.mxu0 %v1696
      %1785 = vmatpush.msra.mxu0 %v1695
      %1786 = vmatpush.msra.mxu0 %v1694
      %1787 = vmatpush.msra.mxu0 %v1693
      %1788 = vmatpush.msra.mxu0 %v1692
      %1789 = vmatpush.msra.mxu0 %v1691
      %1790 = vmatpush.msra.mxu0 %v1690
      %1791 = vmatpush.msra.mxu0 %v1689
      %1792 = vmatpush.msra.mxu0 %v1688
      %1793 = vmatpush.msra.mxu0 %v1687
      %1794 = vmatpush.msra.mxu0 %v1686
      %1795 = vmatpush.msra.mxu0 %v1685
      %1796 = vmatpush.msra.mxu0 %v1684
      %1797 = vmatpush.msra.mxu0 %v1683
      %1798 = vmatpush.msra.mxu0 %v1682
      %1799 = vmatpush.msra.mxu0 %v1681
      %1800 = vmatmul.f32.gmra.mxu0 %v1662
      %v1801 = vpop.f32.mrf.mxu0
      %v1802 = vadd.f32 %v1779, %v1801
      %1803 = vmatmul.f32.gmra.mxu0 %v1663
      %v1804 = vpop.f32.mrf.mxu0
      %v1805 = vadd.f32 %v1782, %v1804
      %1806 = vdwg.mxu0
      %1807 = vmatpush.msra.mxu0 %v1712
      %1808 = vmatpush.msra.mxu0 %v1711
      %1809 = vmatpush.msra.mxu0 %v1710
      %1810 = vmatpush.msra.mxu0 %v1709
      %1811 = vmatpush.msra.mxu0 %v1708
      %1812 = vmatpush.msra.mxu0 %v1707
      %1813 = vmatpush.msra.mxu0 %v1706
      %1814 = vmatpush.msra.mxu0 %v1705
      %1815 = vmatpush.msra.mxu0 %v1704
      %1816 = vmatpush.msra.mxu0 %v1703
      %1817 = vmatpush.msra.mxu0 %v1702
      %1818 = vmatpush.msra.mxu0 %v1701
      %1819 = vmatpush.msra.mxu0 %v1700
      %1820 = vmatpush.msra.mxu0 %v1699
      %1821 = vmatpush.msra.mxu0 %v1698
      %1822 = vmatpush.msra.mxu0 %v1697
      %1823 = vmatmul.f32.gmra.mxu0 %v1754
      %v1824 = vpop.f32.mrf.mxu0
      %v1825 = vadd.f32 %v1802, %v1824
      %1826 = vmatmul.f32.gmra.mxu0 %v1757
      %v1827 = vpop.f32.mrf.mxu0
      %v1828 = vadd.f32 %v1805, %v1827
      %1829 = vdwg.mxu0
      %1830 = vst [vmem:[%s278] sm:$0xff] %v1825
      %1831 = vst [vmem:[%s278 + $0x8] sm:$0xff] %v1828
      %v1832 = vsub.f32 %v1825, %v287
      %v1833 = vsub.f32 %v1828, %v288
      %v1834 = vmul.f32 %v1832, %v1832
      %v1835 = vmul.f32 %v1833, %v1833
      %v1836 = vadd.f32 %v1834, %v1835
      %v1837 = vrot.slane %v1836, 4
      %v1838 = vadd.f32 %v1836, %v1837
      %v1839 = vrot.slane %v1838, 2
      %v1840 = vadd.f32 %v1838, %v1839
      %v1841 = vrot.slane %v1840, 1
      %v1842 = vadd.f32 %v1840, %v1841
      %1843 = vadd.xlane.f32.xlu0 %v1842
      %v1844 = vpop.xlane.xlu0 %1843
      %v1845 = vmul.f32 %v1844, 0.0013020834
      %1846 = vst [vmem:[%s282] sm:$0xff] %v1845
      %p1847 = scmp.lt.s32.totalorder %s18, 1
      %s1848 = scalar_select %p1847, %s18, 1
      %s1849 = smul.addr %s1848, 2
      %s1850 = smul.addr %s1849, 8
      %s1851 = scalar_lea.vmem %s5, %s1850
      %p1852 = scmp.lt.s32.totalorder %s18, 1
      %s1853 = scalar_select %p1852, %s18, 1
      %s1854 = smul.addr %s1853, 8
      %s1855 = scalar_lea.vmem %s6, %s1854
      // Predicated region
      $region41: #{unet_free_supervised_forward.1} parent=39 // pred_check
        %p1856 = pneg %p151
      $region42: #{unet_free_supervised_forward.1} parent=39 // pred_check_branch
        %1858 = sbr.rel (%p1856) target = $region44
      $region43: #{unet_free_supervised_forward.1} parent=39 // pred_region
        _
      $region44: #{unet_free_supervised_forward.1} parent=39 // pred_fallthru
        _
      // Predicated region
      $region45: #{unet_free_supervised_forward.1} parent=39 // pred_check
        %p1859 = pneg %p177
      $region46: #{unet_free_supervised_forward.1} parent=39 // pred_check_branch
        %1861 = sbr.rel (%p1859) target = $region48
      $region47: #{unet_free_supervised_forward.1} parent=39 // pred_region
        _
      $region48: #{unet_free_supervised_forward.1} parent=39 // pred_fallthru
        _
    $region40: #{unet_free_supervised_forward.1} parent=5 // pred_fallthru
      _
    %p1862 = scmp.le.s32.totalorder 2, %s13
    // Predicated region
    $region49: #{unet_free_supervised_forward.1} parent=5 // pred_check
      %p1863 = pneg %p1862
    $region50: #{unet_free_supervised_forward.1} parent=5 // pred_check_branch
      %1865 = sbr.rel (%p1863) target = $region52
    $region51: #{unet_free_supervised_forward.1} parent=5 // pred_region
      %s1866 = ssub.s32 %s13, 2
      // Predicated region
      $region53: #{unet_free_supervised_forward.1} parent=51 // pred_check
        %p1867 = pneg %p157
      $region54: #{unet_free_supervised_forward.1} parent=51 // pred_check_branch
        %1869 = sbr.rel (%p1867) target = $region56
      $region55: #{unet_free_supervised_forward.1} parent=51 // pred_region
        %p1870 = scmp.lt.s32.totalorder %s19, 1
        %s1871 = scalar_select %p1870, %s19, 1
        %s1872 = smul.addr %s1871, 2
        %s1873 = smul.addr %s1872, 8
        %s1874 = scalar_lea.vmem %s5, %s1873
      $region56: #{unet_free_supervised_forward.1} parent=51 // pred_fallthru
        _
      // Predicated region
      $region57: #{unet_free_supervised_forward.1} parent=51 // pred_check
        %p1875 = pneg %p183
      $region58: #{unet_free_supervised_forward.1} parent=51 // pred_check_branch
        %1877 = sbr.rel (%p1875) target = $region60
      $region59: #{unet_free_supervised_forward.1} parent=51 // pred_region
        %p1878 = scmp.lt.s32.totalorder %s19, 1
        %s1879 = scalar_select %p1878, %s19, 1
        %s1880 = smul.addr %s1879, 8
        %s1881 = scalar_lea.vmem %s6, %s1880
      $region60: #{unet_free_supervised_forward.1} parent=51 // pred_fallthru
        _
    $region52: #{unet_free_supervised_forward.1} parent=5 // pred_fallthru
      _
  $region6: #{unet_free_supervised_forward.1} parent=0 // loop_footer
    %s17 = sadd.s32 1, %s13
  $region7: #{unet_free_supervised_forward.1} parent=0 // loop_footer_branch
    %12 = sbr.rel target = $region3
  $region8: #{unet_free_supervised_forward.1} parent=0 // loop_exit
    _

</llo_original>
